<compile_context>
chip_gen: v7x
topology: tpu7x:2x2x1
jax: 0.10.0
libtpu: 0.0.40
codegen_flags: <defaults>
</compile_context>

<pallas_src>
import functools

import jax
import jax.numpy as jnp
import numpy as np
from jax.experimental import pallas as pl
from jax.experimental.pallas import tpu as pltpu


def _choose_tile_n(n: int) -> int:
    """Largest multiple-of-128 divisor of n up to 512; else the full extent."""
    for t in (512, 384, 256, 128):
        if n % t == 0:
            return t
    return n  # small (or ragged) sequences: one tile covering all of N


def _vmem_bytes_estimate(b, d, tile_n, k, with_dist):
    f32 = 4
    est = 0
    est += 2 * b * d * tile_n * f32          # x block (double-buffered)
    est += 2 * b * d * tile_n * f32          # quantize block
    est += 2 * b * tile_n * 4                # index block
    if with_dist:
        est += 2 * b * tile_n * k * f32      # dist block
    est += 2 * (k * d + k) * f32             # codebook + ||e||^2 (constant index)
    est += (k + d * k + tile_n) * f32        # resident accumulators
    est += 4 * k * tile_n * f32              # live intermediates (dist / onehot / iota)
    return est


def _vq_kernel(x_ref, e_ref, esq_ref, *out_refs, with_dist):
    """One grid step: quantize a (B, D, tile_n) slab against the full (K, D) codebook."""
    if with_dist:
        dist_ref, idx_ref, quant_ref, ohsum_ref, esum_ref, closs_ref = out_refs
    else:
        dist_ref = None
        idx_ref, quant_ref, ohsum_ref, esum_ref, closs_ref = out_refs

    step = pl.program_id(0)

    @pl.when(step == 0)
    def _():
        ohsum_ref[...] = jnp.zeros_like(ohsum_ref)
        esum_ref[...] = jnp.zeros_like(esum_ref)
        closs_ref[...] = jnp.zeros_like(closs_ref)

    e = e_ref[...]          # (K, D) f32, grid-invariant (fetched once)
    esq = esq_ref[...]      # (K, 1) f32, precomputed ||e||^2 (hoisted out of the loop)
    batch, _, tile_n = x_ref.shape
    k = e.shape[0]

    # Codebook-index iota, shared across the (static) batch loop.
    iota_k = jax.lax.broadcasted_iota(jnp.int32, (k, tile_n), 0)

    for b in range(batch):                                   # static unroll over batch
        xb = x_ref[b]                                        # (D, tile_n)

        # dist in (K, tile_n) orientation: -(||x||^2 - 2 e.x + ||e||^2)
        xe = jnp.dot(e, xb, preferred_element_type=jnp.float32)      # (K, tile_n) MXU
        xsq = jnp.sum(xb * xb, axis=0, keepdims=True)                # (1, tile_n)
        dist = 2.0 * xe - esq - xsq                                  # (K, tile_n)

        # argmax over codebook (first occurrence on ties); result is lane-dense.
        maxv = jnp.max(dist, axis=0, keepdims=True)                  # (1, tile_n)
        idx = jnp.min(jnp.where(dist == maxv, iota_k, k),
                      axis=0, keepdims=True).astype(jnp.int32)       # (1, tile_n)
        idx_ref[pl.ds(b, 1), :] = idx

        # one-hot dequantize (gather expressed as an MXU matmul), already (D, tile_n).
        onehot = (iota_k == idx).astype(jnp.float32)                 # (K, tile_n)
        quant = jax.lax.dot_general(e, onehot, (((0,), (0,)), ((), ())),
                                    preferred_element_type=jnp.float32)  # (D, tile_n)
        quant_ref[b] = quant

        if with_dist:
            dist_ref[b] = dist.T                                     # (tile_n, K)

        # EMA statistics + lane-parallel commitment-loss partial sums.
        ohsum_ref[...] += jnp.sum(onehot, axis=1, keepdims=True)     # (K, 1)
        esum_ref[...] += jax.lax.dot_general(                        # (D, K) = x^T @ onehot
            xb, onehot, (((1,), (1,)), ((), ())),
            preferred_element_type=jnp.float32)
        diff = quant - xb
        closs_ref[...] += jnp.sum(diff * diff, axis=0, keepdims=True)  # (1, tile_n)


def vector_quantization_forward(x, embed, cluster_size, embed_avg, *,
                                decay=0.99, epsilon=1e-5, commitment_weight=1.0,
                                return_dist=False):
    """Forward of a single VectorQuantization layer (codebook_dim == dim -> Identity proj).

    x:            (B, D, N)  -- PyTorch 'b d n' layout (kept native, no HBM transpose)
    embed:        (K, D)     -- codebook
    cluster_size: (K,)
    embed_avg:    (K, D)
    Returns (quantize (B,D,N), embed_ind (B,N) int32, loss (1,),
             dist (B,N,K) or None, (embed_new, cluster_size_new, embed_avg_new)).
    """
    B, D, N = x.shape
    K, D2 = embed.shape
    assert D == D2, "codebook dim must match channel dim (Identity projection)"

    tile_n = _choose_tile_n(N)
    nt = N // tile_n

    x32 = x.astype(jnp.float32)
    e32 = embed.astype(jnp.float32)
    esq = jnp.sum(e32 * e32, axis=1, keepdims=True)          # (K, 1), hoisted ||e||^2

    kernel = functools.partial(_vq_kernel, with_dist=return_dist)

    out_shape = []
    out_specs = []
    if return_dist:
        out_shape.append(jax.ShapeDtypeStruct((B, N, K), jnp.float32))
        out_specs.append(pl.BlockSpec((B, tile_n, K), lambda j: (0, j, 0)))
    out_shape += [
        jax.ShapeDtypeStruct((B, N), jnp.int32),             # embed_ind (lane-dense)
        jax.ShapeDtypeStruct((B, D, N), jnp.float32),        # quantize (native layout)
        jax.ShapeDtypeStruct((K, 1), jnp.float32),           # one-hot counts
        jax.ShapeDtypeStruct((D, K), jnp.float32),           # x^T @ onehot
        jax.ShapeDtypeStruct((1, tile_n), jnp.float32),      # commit-loss partial sums
    ]
    out_specs += [
        pl.BlockSpec((B, tile_n), lambda j: (0, j)),
        pl.BlockSpec((B, D, tile_n), lambda j: (0, 0, j)),
        pl.BlockSpec((K, 1), lambda j: (0, 0)),              # accumulator
        pl.BlockSpec((D, K), lambda j: (0, 0)),              # accumulator
        pl.BlockSpec((1, tile_n), lambda j: (0, 0)),         # accumulator
    ]

    grid_spec = pltpu.PrefetchScalarGridSpec(
        num_scalar_prefetch=0,
        grid=(nt,),
        in_specs=[
            pl.BlockSpec((B, D, tile_n), lambda j: (0, 0, j)),   # x slab
            pl.BlockSpec((K, D), lambda j: (0, 0)),              # full codebook (const)
            pl.BlockSpec((K, 1), lambda j: (0, 0)),              # ||e||^2 (const)
        ],
        out_specs=out_specs,
    )

    vmem_limit = int(min(max(2 * _vmem_bytes_estimate(B, D, tile_n, K, return_dist),
                             32 * 1024 * 1024), 64 * 1024 * 1024))

    outs = pl.pallas_call(
        kernel,
        out_shape=tuple(out_shape),
        grid_spec=grid_spec,
        compiler_params=pltpu.CompilerParams(
            dimension_semantics=("arbitrary",),   # accumulators carried across the grid
            vmem_limit_bytes=vmem_limit),
    )(x32, e32, esq)

    if return_dist:
        dist, embed_ind, quantize, ohsum, esum, closs = outs
    else:
        embed_ind, quantize, ohsum, esum, closs = outs
        dist = None

    # loss = [0.] + commitment_weight * mse(quantize, x)    (forward value)
    commit_loss = jnp.sum(closs) / (B * N * D)
    loss = jnp.array([0.0], dtype=jnp.float32) + commitment_weight * commit_loss

    # EMA buffer updates (training side effects of EuclideanCodebook.forward).
    counts = ohsum[:, 0]                                               # (K,)
    cluster_size_new = cluster_size * decay + counts * (1.0 - decay)
    embed_avg_new = embed_avg * decay + esum.T * (1.0 - decay)
    cs_sum = cluster_size_new.sum()
    cs_smoothed = (cluster_size_new + epsilon) / (cs_sum + K * epsilon) * cs_sum
    embed_new = embed_avg_new / cs_smoothed[:, None]

    return quantize, embed_ind, loss, dist, (embed_new, cluster_size_new, embed_avg_new)


def distributed_rvq_forward(x, embed, cluster_size, embed_avg, *, n_q=None,
                            decay=0.99, epsilon=1e-5, commitment_weight=1.0):
    """DistributedResidualVectorQuantization.forward (quantize_dropout off, q0_ds_ratio=1).

    x:            (B, D, N)
    embed:        (num_q, K, D)
    cluster_size: (num_q, K)
    embed_avg:    (num_q, K, D)
    Returns (quantized_out, out_indices, out_losses, out_sub_quants, new_buffers).
    """
    num_q_total = embed.shape[0]
    n_q = n_q or num_q_total

    quantized_out = jnp.zeros_like(x)
    residual = x
    all_indices, all_losses, all_sub_quants = [], [], []
    new_embed, new_cs, new_ea = [], [], []

    for qi in range(n_q):
        quantize, embed_ind, loss, _, (e_new, cs_new, ea_new) = vector_quantization_forward(
            residual, embed[qi], cluster_size[qi], embed_avg[qi],
            decay=decay, epsilon=epsilon, commitment_weight=commitment_weight,
            return_dist=False)
        residual = residual - quantize
        quantized_out = quantized_out + quantize
        all_indices.append(embed_ind)
        all_losses.append(loss)
        all_sub_quants.append(quantize)
        new_embed.append(e_new)
        new_cs.append(cs_new)
        new_ea.append(ea_new)

    out_indices = jnp.stack(all_indices)        # (n_q, B, N)
    out_losses = jnp.stack(all_losses)          # (n_q, 1)
    out_sub_quants = jnp.stack(all_sub_quants)  # (n_q, B, D, N)
    new_buffers = (jnp.stack(new_embed), jnp.stack(new_cs), jnp.stack(new_ea))
    # TODO(synk): distrib.broadcast_tensors(buffers) is a no-op here (single host).
    return quantized_out, out_indices, out_losses, out_sub_quants, new_buffers


def _vq_layer_reference(x, embed):
    """Pure-JAX reference for one VectorQuantization layer forward (f32)."""
    B, D, N = x.shape
    flat = jnp.transpose(x, (0, 2, 1)).reshape(B * N, D)
    xe = jnp.dot(flat, embed.T, precision=jax.lax.Precision.HIGHEST)
    dist = -(jnp.sum(flat * flat, axis=1, keepdims=True) - 2.0 * xe
             + jnp.sum(embed * embed, axis=1)[None, :])
    idx = jnp.argmax(dist, axis=-1)
    quant = embed[idx]
    loss = jnp.mean((quant - flat) ** 2)
    quantize = jnp.transpose(quant.reshape(B, N, D), (0, 2, 1))
    return quantize, idx.reshape(B, N), dist.reshape(B, N, -1), loss


if __name__ == "__main__":
    # Small shapes consistent with the module: batch=2, dim=32, seq=8, K=128, 2 quantizers.
    B, D, N, K, NQ = 2, 32, 8, 128, 2

    key = jax.random.PRNGKey(0)
    kx, ke = jax.random.split(key)
    x = jax.random.normal(kx, (B, D, N), dtype=jnp.float32)             # (b d n)
    embed = jax.random.normal(ke, (NQ, K, D), dtype=jnp.float32) * 0.5  # codebooks
    cluster_size = jnp.full((NQ, K), 10.0, dtype=jnp.float32)           # no dead codes
    embed_avg = embed * 10.0

    # ---- single-layer run (exercises the dist output path) + reference check --------
    q0, ind0, loss0, dist0, _ = vector_quantization_forward(
        x, embed[0], cluster_size[0], embed_avg[0], return_dist=True)
    q0, ind0, loss0, dist0 = jax.block_until_ready((q0, ind0, loss0, dist0))
    _, _, ref_dist, _ = _vq_layer_reference(x, embed[0])

    d_k = np.asarray(dist0).reshape(-1, K)
    d_r = np.asarray(ref_dist).reshape(-1, K)
    rel_err = np.linalg.norm(d_k - d_r) / np.linalg.norm(d_r)
    assert rel_err < 1e-2, f"dist mismatch vs reference: rel_err={rel_err}"

    ki = np.asarray(ind0).reshape(-1)
    rows = np.arange(d_k.shape[0])
    assert np.all(d_k[rows, ki] >= d_k.max(axis=-1) - 1e-5), "argmax inconsistent with dist"

    gathered = jnp.transpose(jnp.take(embed[0], ind0, axis=0), (0, 2, 1))
    np.testing.assert_allclose(np.asarray(q0), np.asarray(gathered), atol=1e-5, rtol=0)
    np.testing.assert_allclose(float(loss0[0]), float(jnp.mean((q0 - x) ** 2)),
                               rtol=1e-4, atol=1e-6)

    # ---- full residual-VQ forward ----------------------------------------------------
    outs = distributed_rvq_forward(x, embed, cluster_size, embed_avg)
    quantized_out, out_indices, out_losses, out_sub_quants, new_buffers = \
        jax.block_until_ready(outs)

    assert quantized_out.shape == (B, D, N)
    assert out_indices.shape == (NQ, B, N)
    assert out_losses.shape == (NQ, 1)
    assert out_sub_quants.shape == (NQ, B, D, N)
    assert new_buffers[0].shape == (NQ, K, D)

    print("KERNEL_OK")
</pallas_src>

<mosaic_0001>
module attributes {stable_mosaic.version = 11 : i64} {
  func.func @_vq_kernel(%arg0: i32, %arg1: memref<2x32x8xf32, #tpu.memory_space<vmem>>, %arg2: memref<128x32xf32, #tpu.memory_space<vmem>>, %arg3: memref<128x1xf32, #tpu.memory_space<vmem>>, %arg4: memref<2x8x128xf32, #tpu.memory_space<vmem>>, %arg5: memref<2x8xi32, #tpu.memory_space<vmem>>, %arg6: memref<2x32x8xf32, #tpu.memory_space<vmem>>, %arg7: memref<128x1xf32, #tpu.memory_space<vmem>>, %arg8: memref<32x128xf32, #tpu.memory_space<vmem>>, %arg9: memref<1x8xf32, #tpu.memory_space<vmem>>) attributes {dimension_semantics = [#tpu.dimension_semantics<arbitrary>], iteration_bounds = array<i64: 1>, scalar_prefetch = 0 : i64, scratch_operands = 0 : i64, tpu.core_type = #tpu.core_type<tc>, window_params = [{transform_indices = @transform_0, window_bounds = array<i64: 2, 32, 8>}, {pipeline_mode = #tpu.pipeline_mode<synchronous>, transform_indices = @transform_1, window_bounds = array<i64: 128, 32>}, {pipeline_mode = #tpu.pipeline_mode<synchronous>, transform_indices = @transform_2, window_bounds = array<i64: 128, 1>}, {transform_indices = @transform_3, window_bounds = array<i64: 2, 8, 128>}, {transform_indices = @transform_4, window_bounds = array<i64: 2, 8>}, {transform_indices = @transform_5, window_bounds = array<i64: 2, 32, 8>}, {pipeline_mode = #tpu.pipeline_mode<synchronous>, transform_indices = @transform_6, window_bounds = array<i64: 128, 1>}, {pipeline_mode = #tpu.pipeline_mode<synchronous>, transform_indices = @transform_7, window_bounds = array<i64: 32, 128>}, {pipeline_mode = #tpu.pipeline_mode<synchronous>, transform_indices = @transform_8, window_bounds = array<i64: 1, 8>}]} {
    %c0_i32 = arith.constant 0 : i32
    %0 = arith.cmpi eq, %arg0, %c0_i32 : i32
    %1 = arith.extui %0 : i1 to i32
    %c0_i32_0 = arith.constant 0 : i32
    %2 = arith.cmpi ne, %1, %c0_i32_0 : i32
    scf.if %2 {
      %cst_67 = arith.constant 0.000000e+00 : f32
      %104 = vector.broadcast %cst_67 : f32 to vector<128x1xf32>
      %c0_68 = arith.constant 0 : index
      %c0_69 = arith.constant 0 : index
      %105 = vector.load %arg7[%c0_68, %c0_69] : memref<128x1xf32, #tpu.memory_space<vmem>>, vector<128x1xf32>
      tpu.vector_store %arg7[%c0_68, %c0_69], %104 {strides = array<i32>} : memref<128x1xf32, #tpu.memory_space<vmem>>, vector<128x1xf32>,
      %cst_70 = arith.constant 0.000000e+00 : f32
      %106 = vector.broadcast %cst_70 : f32 to vector<32x128xf32>
      %c0_71 = arith.constant 0 : index
      %c0_72 = arith.constant 0 : index
      %107 = vector.load %arg8[%c0_71, %c0_72] : memref<32x128xf32, #tpu.memory_space<vmem>>, vector<32x128xf32>
      tpu.vector_store %arg8[%c0_71, %c0_72], %106 {strides = array<i32>} : memref<32x128xf32, #tpu.memory_space<vmem>>, vector<32x128xf32>,
      %cst_73 = arith.constant 0.000000e+00 : f32
      %108 = vector.broadcast %cst_73 : f32 to vector<1x8xf32>
      %c0_74 = arith.constant 0 : index
      %c0_75 = arith.constant 0 : index
      %109 = vector.load %arg9[%c0_74, %c0_75] : memref<1x8xf32, #tpu.memory_space<vmem>>, vector<1x8xf32>
      tpu.vector_store %arg9[%c0_74, %c0_75], %108 {strides = array<i32>} : memref<1x8xf32, #tpu.memory_space<vmem>>, vector<1x8xf32>,
    } else {
    }
    %c0 = arith.constant 0 : index
    %c0_1 = arith.constant 0 : index
    %3 = vector.load %arg2[%c0, %c0_1] : memref<128x32xf32, #tpu.memory_space<vmem>>, vector<128x32xf32>
    %c0_2 = arith.constant 0 : index
    %c0_3 = arith.constant 0 : index
    %4 = vector.load %arg3[%c0_2, %c0_3] : memref<128x1xf32, #tpu.memory_space<vmem>>, vector<128x1xf32>
    %5 = tpu.iota {dimensions = array<i32: 0>} : vector<128x8xi32>
    %c0_4 = arith.constant 0 : index
    %c0_5 = arith.constant 0 : index
    %c0_6 = arith.constant 0 : index
    %6 = vector.load %arg1[%c0_4, %c0_5, %c0_6] : memref<2x32x8xf32, #tpu.memory_space<vmem>>, vector<1x32x8xf32>
    %7 = vector.shape_cast %6 : vector<1x32x8xf32> to vector<32x8xf32>
    %cst = arith.constant dense<0.000000e+00> : vector<128x8xf32>
    %8 = tpu.matmul %3, %7, %cst {dimension_numbers = #tpu.dot_dimension_numbers<[1], [0], [0], [1], [0, 0, 1, 1], [], []>} : vector<128x32xf32>, vector<32x8xf32>, vector<128x8xf32> -> vector<128x8xf32>
    %9 = arith.mulf %7, %7 : vector<32x8xf32>
    %cst_7 = arith.constant dense<0.000000e+00> : vector<8xf32>
    %10 = vector.multi_reduction <add>, %9, %cst_7 [0] : vector<32x8xf32> to vector<8xf32>
    %11 = vector.shape_cast %10 : vector<8xf32> to vector<1x8xf32>
    %cst_8 = arith.constant 2.000000e+00 : f32
    %12 = vector.broadcast %cst_8 : f32 to vector<128x8xf32>
    %13 = arith.mulf %12, %8 : vector<128x8xf32>
    %14 = vector.broadcast %4 : vector<128x1xf32> to vector<128x8xf32>
    %15 = arith.subf %13, %14 : vector<128x8xf32>
    %16 = vector.broadcast %11 : vector<1x8xf32> to vector<128x8xf32>
    %17 = arith.subf %15, %16 : vector<128x8xf32>
    %cst_9 = arith.constant dense<0xFF800000> : vector<8xf32>
    %18 = vector.multi_reduction <maximumf>, %17, %cst_9 [0] : vector<128x8xf32> to vector<8xf32>
    %19 = vector.shape_cast %18 : vector<8xf32> to vector<1x8xf32>
    %20 = vector.broadcast %19 : vector<1x8xf32> to vector<128x8xf32>
    %21 = arith.cmpf oeq, %17, %20 : vector<128x8xf32>
    %c128_i32 = arith.constant 128 : i32
    %22 = vector.broadcast %c128_i32 : i32 to vector<128x8xi32>
    %23 = arith.select %21, %5, %22 : vector<128x8xi1>, vector<128x8xi32>
    %cst_10 = arith.constant dense<2147483647> : vector<8xi32>
    %24 = vector.multi_reduction <minsi>, %23, %cst_10 [0] : vector<128x8xi32> to vector<8xi32>
    %25 = vector.shape_cast %24 : vector<8xi32> to vector<1x8xi32>
    %c0_11 = arith.constant 0 : index
    %c0_12 = arith.constant 0 : index
    %26 = vector.load %arg5[%c0_11, %c0_12] : memref<2x8xi32, #tpu.memory_space<vmem>>, vector<1x8xi32>
    tpu.vector_store %arg5[%c0_11, %c0_12], %25 {strides = array<i32>} : memref<2x8xi32, #tpu.memory_space<vmem>>, vector<1x8xi32>,
    %27 = vector.broadcast %25 : vector<1x8xi32> to vector<128x8xi32>
    %28 = arith.cmpi eq, %5, %27 : vector<128x8xi32>
    %29 = arith.extui %28 : vector<128x8xi1> to vector<128x8xi32>
    %30 = arith.sitofp %29 : vector<128x8xi32> to vector<128x8xf32>
    %cst_13 = arith.constant dense<0.000000e+00> : vector<32x8xf32>
    %31 = tpu.matmul %3, %30, %cst_13 {dimension_numbers = #tpu.dot_dimension_numbers<[0], [0], [1], [1], [0, 1, 1, 1], [], []>} : vector<128x32xf32>, vector<128x8xf32>, vector<32x8xf32> -> vector<32x8xf32>
    %c0_14 = arith.constant 0 : index
    %c0_15 = arith.constant 0 : index
    %c0_16 = arith.constant 0 : index
    %32 = vector.load %arg6[%c0_14, %c0_15, %c0_16] : memref<2x32x8xf32, #tpu.memory_space<vmem>>, vector<1x32x8xf32>
    %33 = vector.shape_cast %32 : vector<1x32x8xf32> to vector<32x8xf32>
    %34 = vector.shape_cast %31 : vector<32x8xf32> to vector<1x32x8xf32>
    tpu.vector_store %arg6[%c0_14, %c0_15, %c0_16], %34 {strides = array<i32>} : memref<2x32x8xf32, #tpu.memory_space<vmem>>, vector<1x32x8xf32>,
    %35 = tpu.transpose %17, [1, 0] : vector<128x8xf32> -> vector<8x128xf32>
    %c0_17 = arith.constant 0 : index
    %c0_18 = arith.constant 0 : index
    %c0_19 = arith.constant 0 : index
    %36 = vector.load %arg4[%c0_17, %c0_18, %c0_19] : memref<2x8x128xf32, #tpu.memory_space<vmem>>, vector<1x8x128xf32>
    %37 = vector.shape_cast %36 : vector<1x8x128xf32> to vector<8x128xf32>
    %38 = vector.shape_cast %35 : vector<8x128xf32> to vector<1x8x128xf32>
    tpu.vector_store %arg4[%c0_17, %c0_18, %c0_19], %38 {strides = array<i32>} : memref<2x8x128xf32, #tpu.memory_space<vmem>>, vector<1x8x128xf32>,
    %c0_20 = arith.constant 0 : index
    %c0_21 = arith.constant 0 : index
    %39 = vector.load %arg7[%c0_20, %c0_21] : memref<128x1xf32, #tpu.memory_space<vmem>>, vector<128x1xf32>
    %cst_22 = arith.constant dense<0.000000e+00> : vector<128xf32>
    %40 = vector.multi_reduction <add>, %30, %cst_22 [1] : vector<128x8xf32> to vector<128xf32>
    %41 = vector.shape_cast %40 : vector<128xf32> to vector<128x1xf32>
    %42 = arith.addf %39, %41 : vector<128x1xf32>
    %c0_23 = arith.constant 0 : index
    %c0_24 = arith.constant 0 : index
    %43 = vector.load %arg7[%c0_23, %c0_24] : memref<128x1xf32, #tpu.memory_space<vmem>>, vector<128x1xf32>
    tpu.vector_store %arg7[%c0_23, %c0_24], %42 {strides = array<i32>} : memref<128x1xf32, #tpu.memory_space<vmem>>, vector<128x1xf32>,
    %c0_25 = arith.constant 0 : index
    %c0_26 = arith.constant 0 : index
    %44 = vector.load %arg8[%c0_25, %c0_26] : memref<32x128xf32, #tpu.memory_space<vmem>>, vector<32x128xf32>
    %cst_27 = arith.constant dense<0.000000e+00> : vector<32x128xf32>
    %45 = tpu.matmul %7, %30, %cst_27 {dimension_numbers = #tpu.dot_dimension_numbers<[1], [1], [0], [0], [0, 0, 1, 0], [], []>} : vector<32x8xf32>, vector<128x8xf32>, vector<32x128xf32> -> vector<32x128xf32>
    %46 = arith.addf %44, %45 : vector<32x128xf32>
    %c0_28 = arith.constant 0 : index
    %c0_29 = arith.constant 0 : index
    %47 = vector.load %arg8[%c0_28, %c0_29] : memref<32x128xf32, #tpu.memory_space<vmem>>, vector<32x128xf32>
    tpu.vector_store %arg8[%c0_28, %c0_29], %46 {strides = array<i32>} : memref<32x128xf32, #tpu.memory_space<vmem>>, vector<32x128xf32>,
    %48 = arith.subf %31, %7 : vector<32x8xf32>
    %c0_30 = arith.constant 0 : index
    %c0_31 = arith.constant 0 : index
    %49 = vector.load %arg9[%c0_30, %c0_31] : memref<1x8xf32, #tpu.memory_space<vmem>>, vector<1x8xf32>
    %50 = arith.mulf %48, %48 : vector<32x8xf32>
    %cst_32 = arith.constant dense<0.000000e+00> : vector<8xf32>
    %51 = vector.multi_reduction <add>, %50, %cst_32 [0] : vector<32x8xf32> to vector<8xf32>
    %52 = vector.shape_cast %51 : vector<8xf32> to vector<1x8xf32>
    %53 = arith.addf %49, %52 : vector<1x8xf32>
    %c0_33 = arith.constant 0 : index
    %c0_34 = arith.constant 0 : index
    %54 = vector.load %arg9[%c0_33, %c0_34] : memref<1x8xf32, #tpu.memory_space<vmem>>, vector<1x8xf32>
    tpu.vector_store %arg9[%c0_33, %c0_34], %53 {strides = array<i32>} : memref<1x8xf32, #tpu.memory_space<vmem>>, vector<1x8xf32>,
    %c1 = arith.constant 1 : index
    %c0_35 = arith.constant 0 : index
    %c0_36 = arith.constant 0 : index
    %55 = vector.load %arg1[%c1, %c0_35, %c0_36] : memref<2x32x8xf32, #tpu.memory_space<vmem>>, vector<1x32x8xf32>
    %56 = vector.shape_cast %55 : vector<1x32x8xf32> to vector<32x8xf32>
    %cst_37 = arith.constant dense<0.000000e+00> : vector<128x8xf32>
    %57 = tpu.matmul %3, %56, %cst_37 {dimension_numbers = #tpu.dot_dimension_numbers<[1], [0], [0], [1], [0, 0, 1, 1], [], []>} : vector<128x32xf32>, vector<32x8xf32>, vector<128x8xf32> -> vector<128x8xf32>
    %58 = arith.mulf %56, %56 : vector<32x8xf32>
    %cst_38 = arith.constant dense<0.000000e+00> : vector<8xf32>
    %59 = vector.multi_reduction <add>, %58, %cst_38 [0] : vector<32x8xf32> to vector<8xf32>
    %60 = vector.shape_cast %59 : vector<8xf32> to vector<1x8xf32>
    %cst_39 = arith.constant 2.000000e+00 : f32
    %61 = vector.broadcast %cst_39 : f32 to vector<128x8xf32>
    %62 = arith.mulf %61, %57 : vector<128x8xf32>
    %63 = vector.broadcast %4 : vector<128x1xf32> to vector<128x8xf32>
    %64 = arith.subf %62, %63 : vector<128x8xf32>
    %65 = vector.broadcast %60 : vector<1x8xf32> to vector<128x8xf32>
    %66 = arith.subf %64, %65 : vector<128x8xf32>
    %cst_40 = arith.constant dense<0xFF800000> : vector<8xf32>
    %67 = vector.multi_reduction <maximumf>, %66, %cst_40 [0] : vector<128x8xf32> to vector<8xf32>
    %68 = vector.shape_cast %67 : vector<8xf32> to vector<1x8xf32>
    %69 = vector.broadcast %68 : vector<1x8xf32> to vector<128x8xf32>
    %70 = arith.cmpf oeq, %66, %69 : vector<128x8xf32>
    %c128_i32_41 = arith.constant 128 : i32
    %71 = vector.broadcast %c128_i32_41 : i32 to vector<128x8xi32>
    %72 = arith.select %70, %5, %71 : vector<128x8xi1>, vector<128x8xi32>
    %cst_42 = arith.constant dense<2147483647> : vector<8xi32>
    %73 = vector.multi_reduction <minsi>, %72, %cst_42 [0] : vector<128x8xi32> to vector<8xi32>
    %74 = vector.shape_cast %73 : vector<8xi32> to vector<1x8xi32>
    %c1_43 = arith.constant 1 : index
    %c0_44 = arith.constant 0 : index
    %75 = vector.load %arg5[%c1_43, %c0_44] : memref<2x8xi32, #tpu.memory_space<vmem>>, vector<1x8xi32>
    tpu.vector_store %arg5[%c1_43, %c0_44], %74 {strides = array<i32>} : memref<2x8xi32, #tpu.memory_space<vmem>>, vector<1x8xi32>,
    %76 = vector.broadcast %74 : vector<1x8xi32> to vector<128x8xi32>
    %77 = arith.cmpi eq, %5, %76 : vector<128x8xi32>
    %78 = arith.extui %77 : vector<128x8xi1> to vector<128x8xi32>
    %79 = arith.sitofp %78 : vector<128x8xi32> to vector<128x8xf32>
    %cst_45 = arith.constant dense<0.000000e+00> : vector<32x8xf32>
    %80 = tpu.matmul %3, %79, %cst_45 {dimension_numbers = #tpu.dot_dimension_numbers<[0], [0], [1], [1], [0, 1, 1, 1], [], []>} : vector<128x32xf32>, vector<128x8xf32>, vector<32x8xf32> -> vector<32x8xf32>
    %c1_46 = arith.constant 1 : index
    %c0_47 = arith.constant 0 : index
    %c0_48 = arith.constant 0 : index
    %81 = vector.load %arg6[%c1_46, %c0_47, %c0_48] : memref<2x32x8xf32, #tpu.memory_space<vmem>>, vector<1x32x8xf32>
    %82 = vector.shape_cast %81 : vector<1x32x8xf32> to vector<32x8xf32>
    %83 = vector.shape_cast %80 : vector<32x8xf32> to vector<1x32x8xf32>
    tpu.vector_store %arg6[%c1_46, %c0_47, %c0_48], %83 {strides = array<i32>} : memref<2x32x8xf32, #tpu.memory_space<vmem>>, vector<1x32x8xf32>,
    %84 = tpu.transpose %66, [1, 0] : vector<128x8xf32> -> vector<8x128xf32>
    %c1_49 = arith.constant 1 : index
    %c0_50 = arith.constant 0 : index
    %c0_51 = arith.constant 0 : index
    %85 = vector.load %arg4[%c1_49, %c0_50, %c0_51] : memref<2x8x128xf32, #tpu.memory_space<vmem>>, vector<1x8x128xf32>
    %86 = vector.shape_cast %85 : vector<1x8x128xf32> to vector<8x128xf32>
    %87 = vector.shape_cast %84 : vector<8x128xf32> to vector<1x8x128xf32>
    tpu.vector_store %arg4[%c1_49, %c0_50, %c0_51], %87 {strides = array<i32>} : memref<2x8x128xf32, #tpu.memory_space<vmem>>, vector<1x8x128xf32>,
    %c0_52 = arith.constant 0 : index
    %c0_53 = arith.constant 0 : index
    %88 = vector.load %arg7[%c0_52, %c0_53] : memref<128x1xf32, #tpu.memory_space<vmem>>, vector<128x1xf32>
    %cst_54 = arith.constant dense<0.000000e+00> : vector<128xf32>
    %89 = vector.multi_reduction <add>, %79, %cst_54 [1] : vector<128x8xf32> to vector<128xf32>
    %90 = vector.shape_cast %89 : vector<128xf32> to vector<128x1xf32>
    %91 = arith.addf %88, %90 : vector<128x1xf32>
    %c0_55 = arith.constant 0 : index
    %c0_56 = arith.constant 0 : index
    %92 = vector.load %arg7[%c0_55, %c0_56] : memref<128x1xf32, #tpu.memory_space<vmem>>, vector<128x1xf32>
    tpu.vector_store %arg7[%c0_55, %c0_56], %91 {strides = array<i32>} : memref<128x1xf32, #tpu.memory_space<vmem>>, vector<128x1xf32>,
    %c0_57 = arith.constant 0 : index
    %c0_58 = arith.constant 0 : index
    %93 = vector.load %arg8[%c0_57, %c0_58] : memref<32x128xf32, #tpu.memory_space<vmem>>, vector<32x128xf32>
    %cst_59 = arith.constant dense<0.000000e+00> : vector<32x128xf32>
    %94 = tpu.matmul %56, %79, %cst_59 {dimension_numbers = #tpu.dot_dimension_numbers<[1], [1], [0], [0], [0, 0, 1, 0], [], []>} : vector<32x8xf32>, vector<128x8xf32>, vector<32x128xf32> -> vector<32x128xf32>
    %95 = arith.addf %93, %94 : vector<32x128xf32>
    %c0_60 = arith.constant 0 : index
    %c0_61 = arith.constant 0 : index
    %96 = vector.load %arg8[%c0_60, %c0_61] : memref<32x128xf32, #tpu.memory_space<vmem>>, vector<32x128xf32>
    tpu.vector_store %arg8[%c0_60, %c0_61], %95 {strides = array<i32>} : memref<32x128xf32, #tpu.memory_space<vmem>>, vector<32x128xf32>,
    %97 = arith.subf %80, %56 : vector<32x8xf32>
    %c0_62 = arith.constant 0 : index
    %c0_63 = arith.constant 0 : index
    %98 = vector.load %arg9[%c0_62, %c0_63] : memref<1x8xf32, #tpu.memory_space<vmem>>, vector<1x8xf32>
    %99 = arith.mulf %97, %97 : vector<32x8xf32>
    %cst_64 = arith.constant dense<0.000000e+00> : vector<8xf32>
    %100 = vector.multi_reduction <add>, %99, %cst_64 [0] : vector<32x8xf32> to vector<8xf32>
    %101 = vector.shape_cast %100 : vector<8xf32> to vector<1x8xf32>
    %102 = arith.addf %98, %101 : vector<1x8xf32>
    %c0_65 = arith.constant 0 : index
    %c0_66 = arith.constant 0 : index
    %103 = vector.load %arg9[%c0_65, %c0_66] : memref<1x8xf32, #tpu.memory_space<vmem>>, vector<1x8xf32>
    tpu.vector_store %arg9[%c0_65, %c0_66], %102 {strides = array<i32>} : memref<1x8xf32, #tpu.memory_space<vmem>>, vector<1x8xf32>,
    return
  }
  func.func @transform_0(%arg0: i32) -> (i32, i32, i32) {
    %c0_i32 = arith.constant 0 : i32
    %c0_i32_0 = arith.constant 0 : i32
    %c0_i32_1 = arith.constant 0 : i32
    return %c0_i32, %c0_i32_0, %arg0 : i32, i32, i32
  }
  func.func @transform_1(%arg0: i32) -> (i32, i32) {
    %c0_i32 = arith.constant 0 : i32
    %c0_i32_0 = arith.constant 0 : i32
    %c0_i32_1 = arith.constant 0 : i32
    return %c0_i32, %c0_i32_0 : i32, i32
  }
  func.func @transform_2(%arg0: i32) -> (i32, i32) {
    %c0_i32 = arith.constant 0 : i32
    %c0_i32_0 = arith.constant 0 : i32
    %c0_i32_1 = arith.constant 0 : i32
    return %c0_i32, %c0_i32_0 : i32, i32
  }
  func.func @transform_3(%arg0: i32) -> (i32, i32, i32) {
    %c0_i32 = arith.constant 0 : i32
    %c0_i32_0 = arith.constant 0 : i32
    %c0_i32_1 = arith.constant 0 : i32
    return %c0_i32, %arg0, %c0_i32_0 : i32, i32, i32
  }
  func.func @transform_4(%arg0: i32) -> (i32, i32) {
    %c0_i32 = arith.constant 0 : i32
    %c0_i32_0 = arith.constant 0 : i32
    return %c0_i32, %arg0 : i32, i32
  }
  func.func @transform_5(%arg0: i32) -> (i32, i32, i32) {
    %c0_i32 = arith.constant 0 : i32
    %c0_i32_0 = arith.constant 0 : i32
    %c0_i32_1 = arith.constant 0 : i32
    return %c0_i32, %c0_i32_0, %arg0 : i32, i32, i32
  }
  func.func @transform_6(%arg0: i32) -> (i32, i32) {
    %c0_i32 = arith.constant 0 : i32
    %c0_i32_0 = arith.constant 0 : i32
    %c0_i32_1 = arith.constant 0 : i32
    return %c0_i32, %c0_i32_0 : i32, i32
  }
  func.func @transform_7(%arg0: i32) -> (i32, i32) {
    %c0_i32 = arith.constant 0 : i32
    %c0_i32_0 = arith.constant 0 : i32
    %c0_i32_1 = arith.constant 0 : i32
    return %c0_i32, %c0_i32_0 : i32, i32
  }
  func.func @transform_8(%arg0: i32) -> (i32, i32) {
    %c0_i32 = arith.constant 0 : i32
    %c0_i32_0 = arith.constant 0 : i32
    %c0_i32_1 = arith.constant 0 : i32
    return %c0_i32, %c0_i32_0 : i32, i32
  }
}

</mosaic_0001>

<llo_original>
// kernel: tpu_custom_call.1
$region0: #{tpu_custom_call.1}
  #allocation0 [shape = 'u32[]', space=smem, size = 0x4, offset = 0x4, fixed_abs, tag = 'smem constant byte address 0x4 - core index']
  #allocation1 [shape = 'u32[144,128]{1,0:T(1,128)}', space=vmem, size = 0x12000, scoped, tag = 'internal scratch']
  %s0 = inlined_call_operand.vmem [shape: f32[2,32,8], index: 0, kind: input, shape index: {}]
  %s1 = inlined_call_operand.vmem [shape: f32[128,32], index: 1, kind: input, shape index: {}]
  %s2 = inlined_call_operand.vmem [shape: f32[128,1], index: 2, kind: input, shape index: {}]
  %s3 = inlined_call_operand.hbm [shape: f32[2,8,128], index: 3, kind: output, shape index: {0}]
  %s4 = inlined_call_operand.hbm [shape: s32[2,8], index: 4, kind: output, shape index: {1}]
  %s5 = inlined_call_operand.vmem [shape: f32[2,32,8], index: 5, kind: output, shape index: {2}]
  %s6 = inlined_call_operand.vmem [shape: f32[128,1], index: 6, kind: output, shape index: {3}]
  %s7 = inlined_call_operand.hbm [shape: f32[32,128], index: 7, kind: output, shape index: {4}]
  %s8 = inlined_call_operand.hbm [shape: f32[1,8], index: 8, kind: output, shape index: {5}]
  %9 = xla_tuple %s3, %s4, %s5, %s6, %s7, %s8
  %s10 = sld [smem:[#allocation0]]
  $region66: #{tpu_custom_call.1} parent=0
    _
  %s12 = ssub.s32 1, %s10
  %s13 = scalar_select 0, %s12, %s10
  $region1: #{tpu_custom_call.1} parent=0
    #allocation2 [shape = 'u8[8192]{0}', space=vmem, size = 0x2000, scoped, tag = 'output window, operand 0, single buffered']
    #allocation3 [shape = 's32[1]{0}', space=sflag, size = 0x4, scoped, tag = 'scoped memory for tpu_custom_call.1']
    #allocation4 [shape = 'u8[1024]{0}', space=vmem, size = 0x400, scoped, tag = 'output window, operand 1, single buffered']
    #allocation5 [shape = 's32[1]{0}', space=sflag, size = 0x4, scoped, tag = 'scoped memory for tpu_custom_call.1']
    #allocation6 [shape = 'u8[16384]{0}', space=vmem, size = 0x4000, scoped, tag = 'output window, operand 4, single buffered']
    #allocation7 [shape = 'u8[512]{0}', space=vmem, size = 0x400, scoped, tag = 'output window, operand 5, single buffered']
    #allocation8 [shape = 's32[1]{0}', space=sflag, size = 0x4, scoped, tag = 'scoped memory for tpu_custom_call.1']
    %14 = vsyncpa [#allocation3], 0
    %15 = vsyncpa [#allocation5], 0
    %16 = vsyncpa [#allocation8], 0
    // Predicated region
    $region2: #{tpu_custom_call.1} parent=1 // pred_check
      _
    $region3: #{tpu_custom_call.1} parent=1 // pred_check_branch
      %18 = sbr.rel (0) target = $region5
    $region4: #{tpu_custom_call.1} parent=1 // pred_region
      _
    $region5: #{tpu_custom_call.1} parent=1 // pred_fallthru
      _
    // Predicated region
    $region6: #{tpu_custom_call.1} parent=1 // pred_check
      _
    $region7: #{tpu_custom_call.1} parent=1 // pred_check_branch
      %20 = sbr.rel (0) target = $region9
    $region8: #{tpu_custom_call.1} parent=1 // pred_region
      _
    $region9: #{tpu_custom_call.1} parent=1 // pred_fallthru
      _
    // Predicated region
    $region10: #{tpu_custom_call.1} parent=1 // pred_check
      _
    $region11: #{tpu_custom_call.1} parent=1 // pred_check_branch
      %22 = sbr.rel (0) target = $region13
    $region12: #{tpu_custom_call.1} parent=1 // pred_region
      _
    $region13: #{tpu_custom_call.1} parent=1 // pred_fallthru
      _
    %p23 = scmp.eq.s32.totalorder 0, 0
    // Predicated region
    $region14: #{tpu_custom_call.1} parent=1 // pred_check
      %p24 = pneg %p23
    $region15: #{tpu_custom_call.1} parent=1 // pred_check_branch
      %26 = sbr.rel (%p24) target = $region17
    $region16: #{tpu_custom_call.1} parent=1 // pred_region
      %vm27 = vcmask 7168
      %28 = vst.msk [vmem:[%s6] sm:$0xff] %vm27, 0.0
      %29 = vst.msk [vmem:[%s6 + $0x8] sm:$0xff] %vm27, 0.0
      %30 = vst.msk [vmem:[%s6 + $0x10] sm:$0xff] %vm27, 0.0
      %31 = vst.msk [vmem:[%s6 + $0x18] sm:$0xff] %vm27, 0.0
      %32 = vst.msk [vmem:[%s6 + $0x20] sm:$0xff] %vm27, 0.0
      %33 = vst.msk [vmem:[%s6 + $0x28] sm:$0xff] %vm27, 0.0
      %34 = vst.msk [vmem:[%s6 + $0x30] sm:$0xff] %vm27, 0.0
      %35 = vst.msk [vmem:[%s6 + $0x38] sm:$0xff] %vm27, 0.0
      %36 = vst.msk [vmem:[%s6 + $0x40] sm:$0xff] %vm27, 0.0
      %37 = vst.msk [vmem:[%s6 + $0x48] sm:$0xff] %vm27, 0.0
      %38 = vst.msk [vmem:[%s6 + $0x50] sm:$0xff] %vm27, 0.0
      %39 = vst.msk [vmem:[%s6 + $0x58] sm:$0xff] %vm27, 0.0
      %40 = vst.msk [vmem:[%s6 + $0x60] sm:$0xff] %vm27, 0.0
      %41 = vst.msk [vmem:[%s6 + $0x68] sm:$0xff] %vm27, 0.0
      %42 = vst.msk [vmem:[%s6 + $0x70] sm:$0xff] %vm27, 0.0
      %43 = vst.msk [vmem:[%s6 + $0x78] sm:$0xff] %vm27, 0.0
      %44 = vst [vmem:[#allocation6] sm:$0xff] 0.0
      %45 = vst [vmem:[#allocation6 + $0x8] sm:$0xff] 0.0
      %46 = vst [vmem:[#allocation6 + $0x10] sm:$0xff] 0.0
      %47 = vst [vmem:[#allocation6 + $0x18] sm:$0xff] 0.0
      %vm48 = vcmask 57344
      %49 = vst.msk [vmem:[#allocation7] sm:$0x1] %vm48, 0.0
    $region17: #{tpu_custom_call.1} parent=1 // pred_fallthru
      _
    %v50 = vld [vmem:[%s1] sm:$0xff]
    %v51 = vld [vmem:[%s1 + $0x8] sm:$0xff]
    %v52 = vld [vmem:[%s1 + $0x10] sm:$0xff]
    %v53 = vld [vmem:[%s1 + $0x18] sm:$0xff]
    %v54 = vld [vmem:[%s1 + $0x20] sm:$0xff]
    %v55 = vld [vmem:[%s1 + $0x28] sm:$0xff]
    %v56 = vld [vmem:[%s1 + $0x30] sm:$0xff]
    %v57 = vld [vmem:[%s1 + $0x38] sm:$0xff]
    %v58 = vld [vmem:[%s1 + $0x40] sm:$0xff]
    %v59 = vld [vmem:[%s1 + $0x48] sm:$0xff]
    %v60 = vld [vmem:[%s1 + $0x50] sm:$0xff]
    %v61 = vld [vmem:[%s1 + $0x58] sm:$0xff]
    %v62 = vld [vmem:[%s1 + $0x60] sm:$0xff]
    %v63 = vld [vmem:[%s1 + $0x68] sm:$0xff]
    %v64 = vld [vmem:[%s1 + $0x70] sm:$0xff]
    %v65 = vld [vmem:[%s1 + $0x78] sm:$0xff]
    %v66 = vld [vmem:[%s2] sm:$0xff]
    %v67 = vld [vmem:[%s2 + $0x8] sm:$0xff]
    %v68 = vld [vmem:[%s2 + $0x10] sm:$0xff]
    %v69 = vld [vmem:[%s2 + $0x18] sm:$0xff]
    %v70 = vld [vmem:[%s2 + $0x20] sm:$0xff]
    %v71 = vld [vmem:[%s2 + $0x28] sm:$0xff]
    %v72 = vld [vmem:[%s2 + $0x30] sm:$0xff]
    %v73 = vld [vmem:[%s2 + $0x38] sm:$0xff]
    %v74 = vld [vmem:[%s2 + $0x40] sm:$0xff]
    %v75 = vld [vmem:[%s2 + $0x48] sm:$0xff]
    %v76 = vld [vmem:[%s2 + $0x50] sm:$0xff]
    %v77 = vld [vmem:[%s2 + $0x58] sm:$0xff]
    %v78 = vld [vmem:[%s2 + $0x60] sm:$0xff]
    %v79 = vld [vmem:[%s2 + $0x68] sm:$0xff]
    %v80 = vld [vmem:[%s2 + $0x70] sm:$0xff]
    %v81 = vld [vmem:[%s2 + $0x78] sm:$0xff]
    %v82 = vlaneseq
    %v83 = vshrl.u32 %v82, 7
    %v84 = vadd.s32 %v83, 8
    %v85 = vadd.s32 %v83, 16
    %v86 = vadd.s32 %v83, 24
    %v87 = vadd.s32 %v83, 32
    %v88 = vadd.s32 %v83, 40
    %v89 = vadd.s32 %v83, 48
    %v90 = vadd.s32 %v83, 56
    %v91 = vadd.s32 %v83, 64
    %v92 = vadd.s32 %v83, 72
    %v93 = vadd.s32 %v83, 80
    %v94 = vadd.s32 %v83, 88
    %v95 = vadd.s32 %v83, 96
    %v96 = vadd.s32 %v83, 104
    %v97 = vadd.s32 %v83, 112
    %v98 = vadd.s32 %v83, 120
    %v99 = vld [vmem:[%s0] sm:$0xff]
    %v100 = vld [vmem:[%s0 + $0x8] sm:$0xff]
    %v101 = vld [vmem:[%s0 + $0x10] sm:$0xff]
    %v102 = vld [vmem:[%s0 + $0x18] sm:$0xff]
    %vm103 = vcmask 261120
    %v105 = vsel %vm103, %v50, 0
    %v108 = vsel %vm103, %v51, 0
    %v111 = vsel %vm103, %v52, 0
    %v114 = vsel %vm103, %v53, 0
    %v117 = vsel %vm103, %v54, 0
    %v120 = vsel %vm103, %v55, 0
    %v123 = vsel %vm103, %v56, 0
    %v126 = vsel %vm103, %v57, 0
    %v129 = vsel %vm103, %v58, 0
    %v132 = vsel %vm103, %v59, 0
    %v135 = vsel %vm103, %v60, 0
    %v138 = vsel %vm103, %v61, 0
    %v141 = vsel %vm103, %v62, 0
    %v144 = vsel %vm103, %v63, 0
    %v147 = vsel %vm103, %v64, 0
    %v150 = vsel %vm103, %v65, 0
    %152 = vmatprep.subr.mxu0 0.0
    %153 = vmatpush1.msra.mxu0 %v99
    %154 = vmatprep.subr.mxu0 0.0
    %155 = vmatpush1.msra.mxu0 %v100
    %156 = vmatprep.subr.mxu0 0.0
    %157 = vmatpush1.msra.mxu0 %v101
    %158 = vmatprep.subr.mxu0 0.0
    %159 = vmatpush1.msra.mxu0 %v102
    %160 = vmatprep.subr.mxu0 0.0
    %161 = vmatpush1.msra.mxu0 0.0
    %162 = vmatprep.subr.mxu0 0.0
    %163 = vmatpush1.msra.mxu0 0.0
    %164 = vmatprep.subr.mxu0 0.0
    %165 = vmatpush1.msra.mxu0 0.0
    %166 = vmatprep.subr.mxu0 0.0
    %167 = vmatpush1.msra.mxu0 0.0
    %168 = vmatprep.subr.mxu0 0.0
    %169 = vmatpush1.msra.mxu0 0.0
    %170 = vmatprep.subr.mxu0 0.0
    %171 = vmatpush1.msra.mxu0 0.0
    %172 = vmatprep.subr.mxu0 0.0
    %173 = vmatpush1.msra.mxu0 0.0
    %174 = vmatprep.subr.mxu0 0.0
    %175 = vmatpush1.msra.mxu0 0.0
    %176 = vmatprep.subr.mxu0 0.0
    %177 = vmatpush1.msra.mxu0 0.0
    %178 = vmatprep.subr.mxu0 0.0
    %179 = vmatpush1.msra.mxu0 0.0
    %180 = vmatprep.subr.mxu0 0.0
    %181 = vmatpush1.msra.mxu0 0.0
    %182 = vmatprep.subr.mxu0 0.0
    %183 = vmatpush1.msra.mxu0 0.0
    %184 = vmatprep.subr.mxu0 0.0
    %185 = vmatpush1.msra.mxu0 0.0
    %186 = vmatprep.subr.mxu0 0.0
    %187 = vmatpush1.msra.mxu0 0.0
    %188 = vmatprep.subr.mxu0 0.0
    %189 = vmatpush1.msra.mxu0 0.0
    %190 = vmatprep.subr.mxu0 0.0
    %191 = vmatpush1.msra.mxu0 0.0
    %192 = vmatprep.subr.mxu0 0.0
    %193 = vmatpush1.msra.mxu0 0.0
    %194 = vmatprep.subr.mxu0 0.0
    %195 = vmatpush1.msra.mxu0 0.0
    %196 = vmatprep.subr.mxu0 0.0
    %197 = vmatpush1.msra.mxu0 0.0
    %198 = vmatprep.subr.mxu0 0.0
    %199 = vmatpush1.msra.mxu0 0.0
    %200 = vmatprep.subr.mxu0 0.0
    %201 = vmatpush1.msra.mxu0 0.0
    %202 = vmatprep.subr.mxu0 0.0
    %203 = vmatpush1.msra.mxu0 0.0
    %204 = vmatprep.subr.mxu0 0.0
    %205 = vmatpush1.msra.mxu0 0.0
    %206 = vmatprep.subr.mxu0 0.0
    %207 = vmatpush1.msra.mxu0 0.0
    %208 = vmatprep.subr.mxu0 0.0
    %209 = vmatpush1.msra.mxu0 0.0
    %210 = vmatprep.subr.mxu0 0.0
    %211 = vmatpush1.msra.mxu0 0.0
    %212 = vmatprep.subr.mxu0 0.0
    %213 = vmatpush1.msra.mxu0 0.0
    %214 = vmatprep.subr.mxu0 0.0
    %215 = vmatpush1.msra.mxu0 0.0
    %216 = vmatprep.mubr.f32.mxu0 0.0
    %217 = vmatmul.mubr.f32.gmra.mrb[0].mxu0 %v105
    %v218 = vpop.f32.mrb[0].mxu0
    %v219 = vadd.f32 0.0, %v218
    %v220 = vpop.f32.mrb[0].mxu0
    %221 = vmatprep.mubr.f32.mxu0 0.0
    %222 = vmatmul.mubr.f32.gmra.mrb[0].mxu0 %v108
    %v223 = vpop.f32.mrb[0].mxu0
    %v224 = vadd.f32 0.0, %v223
    %v225 = vpop.f32.mrb[0].mxu0
    %226 = vmatprep.mubr.f32.mxu0 0.0
    %227 = vmatmul.mubr.f32.gmra.mrb[0].mxu0 %v111
    %v228 = vpop.f32.mrb[0].mxu0
    %v229 = vadd.f32 0.0, %v228
    %v230 = vpop.f32.mrb[0].mxu0
    %231 = vmatprep.mubr.f32.mxu0 0.0
    %232 = vmatmul.mubr.f32.gmra.mrb[0].mxu0 %v114
    %v233 = vpop.f32.mrb[0].mxu0
    %v234 = vadd.f32 0.0, %v233
    %v235 = vpop.f32.mrb[0].mxu0
    %236 = vmatprep.mubr.f32.mxu0 0.0
    %237 = vmatmul.mubr.f32.gmra.mrb[0].mxu0 %v117
    %v238 = vpop.f32.mrb[0].mxu0
    %v239 = vadd.f32 0.0, %v238
    %v240 = vpop.f32.mrb[0].mxu0
    %241 = vmatprep.mubr.f32.mxu0 0.0
    %242 = vmatmul.mubr.f32.gmra.mrb[0].mxu0 %v120
    %v243 = vpop.f32.mrb[0].mxu0
    %v244 = vadd.f32 0.0, %v243
    %v245 = vpop.f32.mrb[0].mxu0
    %246 = vmatprep.mubr.f32.mxu0 0.0
    %247 = vmatmul.mubr.f32.gmra.mrb[0].mxu0 %v123
    %v248 = vpop.f32.mrb[0].mxu0
    %v249 = vadd.f32 0.0, %v248
    %v250 = vpop.f32.mrb[0].mxu0
    %251 = vmatprep.mubr.f32.mxu0 0.0
    %252 = vmatmul.mubr.f32.gmra.mrb[0].mxu0 %v126
    %v253 = vpop.f32.mrb[0].mxu0
    %v254 = vadd.f32 0.0, %v253
    %v255 = vpop.f32.mrb[0].mxu0
    %256 = vmatprep.mubr.f32.mxu0 0.0
    %257 = vmatmul.mubr.f32.gmra.mrb[0].mxu0 %v129
    %v258 = vpop.f32.mrb[0].mxu0
    %v259 = vadd.f32 0.0, %v258
    %v260 = vpop.f32.mrb[0].mxu0
    %261 = vmatprep.mubr.f32.mxu0 0.0
    %262 = vmatmul.mubr.f32.gmra.mrb[0].mxu0 %v132
    %v263 = vpop.f32.mrb[0].mxu0
    %v264 = vadd.f32 0.0, %v263
    %v265 = vpop.f32.mrb[0].mxu0
    %266 = vmatprep.mubr.f32.mxu0 0.0
    %267 = vmatmul.mubr.f32.gmra.mrb[0].mxu0 %v135
    %v268 = vpop.f32.mrb[0].mxu0
    %v269 = vadd.f32 0.0, %v268
    %v270 = vpop.f32.mrb[0].mxu0
    %271 = vmatprep.mubr.f32.mxu0 0.0
    %272 = vmatmul.mubr.f32.gmra.mrb[0].mxu0 %v138
    %v273 = vpop.f32.mrb[0].mxu0
    %v274 = vadd.f32 0.0, %v273
    %v275 = vpop.f32.mrb[0].mxu0
    %276 = vmatprep.mubr.f32.mxu0 0.0
    %277 = vmatmul.mubr.f32.gmra.mrb[0].mxu0 %v141
    %v278 = vpop.f32.mrb[0].mxu0
    %v279 = vadd.f32 0.0, %v278
    %v280 = vpop.f32.mrb[0].mxu0
    %281 = vmatprep.mubr.f32.mxu0 0.0
    %282 = vmatmul.mubr.f32.gmra.mrb[0].mxu0 %v144
    %v283 = vpop.f32.mrb[0].mxu0
    %v284 = vadd.f32 0.0, %v283
    %v285 = vpop.f32.mrb[0].mxu0
    %286 = vmatprep.mubr.f32.mxu0 0.0
    %287 = vmatmul.mubr.f32.gmra.mrb[0].mxu0 %v147
    %v288 = vpop.f32.mrb[0].mxu0
    %v289 = vadd.f32 0.0, %v288
    %v290 = vpop.f32.mrb[0].mxu0
    %291 = vmatprep.mubr.f32.mxu0 0.0
    %292 = vmatmul.mubr.f32.gmra.mrb[0].mxu0 %v150
    %v293 = vpop.f32.mrb[0].mxu0
    %v294 = vadd.f32 0.0, %v293
    %v295 = vpop.f32.mrb[0].mxu0
    %296 = vdwg.mxu0
    %v297 = vmul.f32 %v99, %v99
    %v298 = vmul.f32 %v100, %v100
    %v299 = vmul.f32 %v101, %v101
    %v300 = vmul.f32 %v102, %v102
    %vm301 = vcmask 64512
    %v302 = vsel %vm301, %v297, 0.0
    %v303 = vsel %vm301, %v298, 0.0
    %v304 = vadd.f32 %v302, %v303
    %v305 = vsel %vm301, %v299, 0.0
    %v306 = vadd.f32 %v304, %v305
    %v307 = vsel %vm301, %v300, 0.0
    %v308 = vadd.f32 %v306, %v307
    %v309 = vrot.slane %v308, 4
    %v310 = vadd.f32 %v308, %v309
    %v311 = vrot.slane %v310, 2
    %v312 = vadd.f32 %v310, %v311
    %v313 = vrot.slane %v312, 1
    %v314 = vadd.f32 %v312, %v313
    %v315 = vmul.f32 %v219, 2.0
    %v316 = vmul.f32 %v224, 2.0
    %v317 = vmul.f32 %v229, 2.0
    %v318 = vmul.f32 %v234, 2.0
    %v319 = vmul.f32 %v239, 2.0
    %v320 = vmul.f32 %v244, 2.0
    %v321 = vmul.f32 %v249, 2.0
    %v322 = vmul.f32 %v254, 2.0
    %v323 = vmul.f32 %v259, 2.0
    %v324 = vmul.f32 %v264, 2.0
    %v325 = vmul.f32 %v269, 2.0
    %v326 = vmul.f32 %v274, 2.0
    %v327 = vmul.f32 %v279, 2.0
    %v328 = vmul.f32 %v284, 2.0
    %v329 = vmul.f32 %v289, 2.0
    %v330 = vmul.f32 %v294, 2.0
    %332 = vset.pattern.permute.xlu0 0
    %333 = vperm.xlu0 %332, %v66
    %v334 = vpop.permute.xlu0 %333
    %337 = vset.pattern.permute.xlu0 0
    %338 = vperm.xlu0 %337, %v67
    %v339 = vpop.permute.xlu0 %338
    %342 = vset.pattern.permute.xlu0 0
    %343 = vperm.xlu0 %342, %v68
    %v344 = vpop.permute.xlu0 %343
    %347 = vset.pattern.permute.xlu0 0
    %348 = vperm.xlu0 %347, %v69
    %v349 = vpop.permute.xlu0 %348
    %352 = vset.pattern.permute.xlu0 0
    %353 = vperm.xlu0 %352, %v70
    %v354 = vpop.permute.xlu0 %353
    %357 = vset.pattern.permute.xlu0 0
    %358 = vperm.xlu0 %357, %v71
    %v359 = vpop.permute.xlu0 %358
    %362 = vset.pattern.permute.xlu0 0
    %363 = vperm.xlu0 %362, %v72
    %v364 = vpop.permute.xlu0 %363
    %367 = vset.pattern.permute.xlu0 0
    %368 = vperm.xlu0 %367, %v73
    %v369 = vpop.permute.xlu0 %368
    %372 = vset.pattern.permute.xlu0 0
    %373 = vperm.xlu0 %372, %v74
    %v374 = vpop.permute.xlu0 %373
    %377 = vset.pattern.permute.xlu0 0
    %378 = vperm.xlu0 %377, %v75
    %v379 = vpop.permute.xlu0 %378
    %382 = vset.pattern.permute.xlu0 0
    %383 = vperm.xlu0 %382, %v76
    %v384 = vpop.permute.xlu0 %383
    %387 = vset.pattern.permute.xlu0 0
    %388 = vperm.xlu0 %387, %v77
    %v389 = vpop.permute.xlu0 %388
    %392 = vset.pattern.permute.xlu0 0
    %393 = vperm.xlu0 %392, %v78
    %v394 = vpop.permute.xlu0 %393
    %397 = vset.pattern.permute.xlu0 0
    %398 = vperm.xlu0 %397, %v79
    %v399 = vpop.permute.xlu0 %398
    %402 = vset.pattern.permute.xlu0 0
    %403 = vperm.xlu0 %402, %v80
    %v404 = vpop.permute.xlu0 %403
    %407 = vset.pattern.permute.xlu0 0
    %408 = vperm.xlu0 %407, %v81
    %v409 = vpop.permute.xlu0 %408
    %v411 = vsub.f32 %v315, %v334
    %v412 = vsub.f32 %v316, %v339
    %v413 = vsub.f32 %v317, %v344
    %v414 = vsub.f32 %v318, %v349
    %v415 = vsub.f32 %v319, %v354
    %v416 = vsub.f32 %v320, %v359
    %v417 = vsub.f32 %v321, %v364
    %v418 = vsub.f32 %v322, %v369
    %v419 = vsub.f32 %v323, %v374
    %v420 = vsub.f32 %v324, %v379
    %v421 = vsub.f32 %v325, %v384
    %v422 = vsub.f32 %v326, %v389
    %v423 = vsub.f32 %v327, %v394
    %v424 = vsub.f32 %v328, %v399
    %v425 = vsub.f32 %v329, %v404
    %v426 = vsub.f32 %v330, %v409
    %v427 = vsub.f32 %v411, %v314
    %v428 = vsub.f32 %v412, %v314
    %v429 = vsub.f32 %v413, %v314
    %v430 = vsub.f32 %v414, %v314
    %v431 = vsub.f32 %v415, %v314
    %v432 = vsub.f32 %v416, %v314
    %v433 = vsub.f32 %v417, %v314
    %v434 = vsub.f32 %v418, %v314
    %v435 = vsub.f32 %v419, %v314
    %v436 = vsub.f32 %v420, %v314
    %v437 = vsub.f32 %v421, %v314
    %v438 = vsub.f32 %v422, %v314
    %v439 = vsub.f32 %v423, %v314
    %v440 = vsub.f32 %v424, %v314
    %v441 = vsub.f32 %v425, %v314
    %v442 = vsub.f32 %v426, %v314
    %v443 = vsel %vm301, %v427, -inf
    %v444 = vsel %vm301, %v428, -inf
    %v445 = vsel %vm301, %v429, -inf
    %v446 = vsel %vm301, %v430, -inf
    %v447 = vsel %vm301, %v431, -inf
    %v448 = vmax.f32 %v443, %v447
    %v449 = vsel %vm301, %v432, -inf
    %v450 = vmax.f32 %v444, %v449
    %v451 = vsel %vm301, %v433, -inf
    %v452 = vmax.f32 %v445, %v451
    %v453 = vsel %vm301, %v434, -inf
    %v454 = vmax.f32 %v446, %v453
    %v455 = vsel %vm301, %v435, -inf
    %v456 = vmax.f32 %v448, %v455
    %v457 = vsel %vm301, %v436, -inf
    %v458 = vmax.f32 %v450, %v457
    %v459 = vsel %vm301, %v437, -inf
    %v460 = vmax.f32 %v452, %v459
    %v461 = vsel %vm301, %v438, -inf
    %v462 = vmax.f32 %v454, %v461
    %v463 = vsel %vm301, %v439, -inf
    %v464 = vmax.f32 %v456, %v463
    %v465 = vsel %vm301, %v440, -inf
    %v466 = vmax.f32 %v458, %v465
    %v467 = vsel %vm301, %v441, -inf
    %v468 = vmax.f32 %v460, %v467
    %v469 = vsel %vm301, %v442, -inf
    %v470 = vmax.f32 %v462, %v469
    %v471 = vmax.f32 %v464, %v466
    %v472 = vmax.f32 %v468, %v470
    %v473 = vmax.f32 %v471, %v472
    %v474 = vrot.slane %v473, 4
    %v475 = vmax.f32 %v473, %v474
    %v476 = vrot.slane %v475, 2
    %v477 = vmax.f32 %v475, %v476
    %v478 = vrot.slane %v477, 1
    %v479 = vmax.f32 %v477, %v478
    %vm480 = vcmp.eq.f32.partialorder %v427, %v479
    %vm481 = vcmp.eq.f32.partialorder %v428, %v479
    %vm482 = vcmp.eq.f32.partialorder %v429, %v479
    %vm483 = vcmp.eq.f32.partialorder %v430, %v479
    %vm484 = vcmp.eq.f32.partialorder %v431, %v479
    %vm485 = vcmp.eq.f32.partialorder %v432, %v479
    %vm486 = vcmp.eq.f32.partialorder %v433, %v479
    %vm487 = vcmp.eq.f32.partialorder %v434, %v479
    %vm488 = vcmp.eq.f32.partialorder %v435, %v479
    %vm489 = vcmp.eq.f32.partialorder %v436, %v479
    %vm490 = vcmp.eq.f32.partialorder %v437, %v479
    %vm491 = vcmp.eq.f32.partialorder %v438, %v479
    %vm492 = vcmp.eq.f32.partialorder %v439, %v479
    %vm493 = vcmp.eq.f32.partialorder %v440, %v479
    %vm494 = vcmp.eq.f32.partialorder %v441, %v479
    %vm495 = vcmp.eq.f32.partialorder %v442, %v479
    %v496 = vsel %vm480, %v83, 128
    %v497 = vsel %vm481, %v84, 128
    %v498 = vsel %vm482, %v85, 128
    %v499 = vsel %vm483, %v86, 128
    %v500 = vsel %vm484, %v87, 128
    %v501 = vsel %vm485, %v88, 128
    %v502 = vsel %vm486, %v89, 128
    %v503 = vsel %vm487, %v90, 128
    %v504 = vsel %vm488, %v91, 128
    %v505 = vsel %vm489, %v92, 128
    %v506 = vsel %vm490, %v93, 128
    %v507 = vsel %vm491, %v94, 128
    %v508 = vsel %vm492, %v95, 128
    %v509 = vsel %vm493, %v96, 128
    %v510 = vsel %vm494, %v97, 128
    %v511 = vsel %vm495, %v98, 128
    %v512 = vsel %vm301, %v496, 2147483647
    %v513 = vsel %vm301, %v497, 2147483647
    %v514 = vsel %vm301, %v498, 2147483647
    %v515 = vsel %vm301, %v499, 2147483647
    %v516 = vsel %vm301, %v500, 2147483647
    %vm517 = vcmp.lt.s32.totalorder %v512, %v516
    %v518 = vsel %vm517, %v512, %v516
    %v519 = vsel %vm301, %v501, 2147483647
    %vm520 = vcmp.lt.s32.totalorder %v513, %v519
    %v521 = vsel %vm520, %v513, %v519
    %v522 = vsel %vm301, %v502, 2147483647
    %vm523 = vcmp.lt.s32.totalorder %v514, %v522
    %v524 = vsel %vm523, %v514, %v522
    %v525 = vsel %vm301, %v503, 2147483647
    %vm526 = vcmp.lt.s32.totalorder %v515, %v525
    %v527 = vsel %vm526, %v515, %v525
    %v528 = vsel %vm301, %v504, 2147483647
    %vm529 = vcmp.lt.s32.totalorder %v518, %v528
    %v530 = vsel %vm529, %v518, %v528
    %v531 = vsel %vm301, %v505, 2147483647
    %vm532 = vcmp.lt.s32.totalorder %v521, %v531
    %v533 = vsel %vm532, %v521, %v531
    %v534 = vsel %vm301, %v506, 2147483647
    %vm535 = vcmp.lt.s32.totalorder %v524, %v534
    %v536 = vsel %vm535, %v524, %v534
    %v537 = vsel %vm301, %v507, 2147483647
    %vm538 = vcmp.lt.s32.totalorder %v527, %v537
    %v539 = vsel %vm538, %v527, %v537
    %v540 = vsel %vm301, %v508, 2147483647
    %vm541 = vcmp.lt.s32.totalorder %v530, %v540
    %v542 = vsel %vm541, %v530, %v540
    %v543 = vsel %vm301, %v509, 2147483647
    %vm544 = vcmp.lt.s32.totalorder %v533, %v543
    %v545 = vsel %vm544, %v533, %v543
    %v546 = vsel %vm301, %v510, 2147483647
    %vm547 = vcmp.lt.s32.totalorder %v536, %v546
    %v548 = vsel %vm547, %v536, %v546
    %v549 = vsel %vm301, %v511, 2147483647
    %vm550 = vcmp.lt.s32.totalorder %v539, %v549
    %v551 = vsel %vm550, %v539, %v549
    %vm552 = vcmp.lt.s32.totalorder %v542, %v545
    %v553 = vsel %vm552, %v542, %v545
    %vm554 = vcmp.lt.s32.totalorder %v548, %v551
    %v555 = vsel %vm554, %v548, %v551
    %vm556 = vcmp.lt.s32.totalorder %v553, %v555
    %v557 = vsel %vm556, %v553, %v555
    %v558 = vrot.slane %v557, 4
    %vm559 = vcmp.lt.s32.totalorder %v557, %v558
    %v560 = vsel %vm559, %v557, %v558
    %v561 = vrot.slane %v560, 2
    %vm562 = vcmp.lt.s32.totalorder %v560, %v561
    %v563 = vsel %vm562, %v560, %v561
    %v564 = vrot.slane %v563, 1
    %vm565 = vcmp.lt.s32.totalorder %v563, %v564
    %v566 = vsel %vm565, %v563, %v564
    %vm567 = vcmask 57344
    %568 = vst.msk [vmem:[#allocation4] sm:$0x1] %vm567, %v566
    %vm569 = vcmp.eq.s32.totalorder %v83, %v566
    %vm570 = vcmp.eq.s32.totalorder %v84, %v566
    %vm571 = vcmp.eq.s32.totalorder %v85, %v566
    %vm572 = vcmp.eq.s32.totalorder %v86, %v566
    %vm573 = vcmp.eq.s32.totalorder %v87, %v566
    %vm574 = vcmp.eq.s32.totalorder %v88, %v566
    %vm575 = vcmp.eq.s32.totalorder %v89, %v566
    %vm576 = vcmp.eq.s32.totalorder %v90, %v566
    %vm577 = vcmp.eq.s32.totalorder %v91, %v566
    %vm578 = vcmp.eq.s32.totalorder %v92, %v566
    %vm579 = vcmp.eq.s32.totalorder %v93, %v566
    %vm580 = vcmp.eq.s32.totalorder %v94, %v566
    %vm581 = vcmp.eq.s32.totalorder %v95, %v566
    %vm582 = vcmp.eq.s32.totalorder %v96, %v566
    %vm583 = vcmp.eq.s32.totalorder %v97, %v566
    %vm584 = vcmp.eq.s32.totalorder %v98, %v566
    %v585 = vsel %vm569, 1, 0
    %v586 = vsel %vm570, 1, 0
    %v587 = vsel %vm571, 1, 0
    %v588 = vsel %vm572, 1, 0
    %v589 = vsel %vm573, 1, 0
    %v590 = vsel %vm574, 1, 0
    %v591 = vsel %vm575, 1, 0
    %v592 = vsel %vm576, 1, 0
    %v593 = vsel %vm577, 1, 0
    %v594 = vsel %vm578, 1, 0
    %v595 = vsel %vm579, 1, 0
    %v596 = vsel %vm580, 1, 0
    %v597 = vsel %vm581, 1, 0
    %v598 = vsel %vm582, 1, 0
    %v599 = vsel %vm583, 1, 0
    %v600 = vsel %vm584, 1, 0
    %v601 = vcvt.s32.f32 %v585
    %v602 = vcvt.s32.f32 %v586
    %v603 = vcvt.s32.f32 %v587
    %v604 = vcvt.s32.f32 %v588
    %v605 = vcvt.s32.f32 %v589
    %v606 = vcvt.s32.f32 %v590
    %v607 = vcvt.s32.f32 %v591
    %v608 = vcvt.s32.f32 %v592
    %v609 = vcvt.s32.f32 %v593
    %v610 = vcvt.s32.f32 %v594
    %v611 = vcvt.s32.f32 %v595
    %v612 = vcvt.s32.f32 %v596
    %v613 = vcvt.s32.f32 %v597
    %v614 = vcvt.s32.f32 %v598
    %v615 = vcvt.s32.f32 %v599
    %v616 = vcvt.s32.f32 %v600
    %617 = vxpose.xlu0.b32.start [1/16] %v50, 128
    %618 = vxpose.xlu0.b32.cont [2/16] %v51, 128
    %619 = vxpose.xlu0.b32.cont [3/16] %v52, 128
    %620 = vxpose.xlu0.b32.cont [4/16] %v53, 128
    %621 = vxpose.xlu0.b32.cont [5/16] %v54, 128
    %622 = vxpose.xlu0.b32.cont [6/16] %v55, 128
    %623 = vxpose.xlu0.b32.cont [7/16] %v56, 128
    %624 = vxpose.xlu0.b32.cont [8/16] %v57, 128
    %625 = vxpose.xlu0.b32.cont [9/16] %v58, 128
    %626 = vxpose.xlu0.b32.cont [10/16] %v59, 128
    %627 = vxpose.xlu0.b32.cont [11/16] %v60, 128
    %628 = vxpose.xlu0.b32.cont [12/16] %v61, 128
    %629 = vxpose.xlu0.b32.cont [13/16] %v62, 128
    %630 = vxpose.xlu0.b32.cont [14/16] %v63, 128
    %631 = vxpose.xlu0.b32.cont [15/16] %v64, 128
    %632 = vxpose.xlu0.b32.end [16/16] %v65, 128
    %v633 = vpop.trf.xlu0
    %v634 = vpop.trf.xlu0
    %v635 = vpop.trf.xlu0
    %v636 = vpop.trf.xlu0
    %v637 = vpop.trf.xlu0
    %v638 = vpop.trf.xlu0
    %v639 = vpop.trf.xlu0
    %v640 = vpop.trf.xlu0
    %v641 = vpop.trf.xlu0
    %v642 = vpop.trf.xlu0
    %v643 = vpop.trf.xlu0
    %v644 = vpop.trf.xlu0
    %v645 = vpop.trf.xlu0
    %v646 = vpop.trf.xlu0
    %v647 = vpop.trf.xlu0
    %v648 = vpop.trf.xlu0
    %649 = vmatprep.subr.mxu0 0.0
    %650 = vmatpush1.msra.mxu0 %v601
    %651 = vmatprep.subr.mxu0 0.0
    %652 = vmatpush1.msra.mxu0 %v602
    %653 = vmatprep.subr.mxu0 0.0
    %654 = vmatpush1.msra.mxu0 %v603
    %655 = vmatprep.subr.mxu0 0.0
    %656 = vmatpush1.msra.mxu0 %v604
    %657 = vmatprep.subr.mxu0 0.0
    %658 = vmatpush1.msra.mxu0 %v605
    %659 = vmatprep.subr.mxu0 0.0
    %660 = vmatpush1.msra.mxu0 %v606
    %661 = vmatprep.subr.mxu0 0.0
    %662 = vmatpush1.msra.mxu0 %v607
    %663 = vmatprep.subr.mxu0 0.0
    %664 = vmatpush1.msra.mxu0 %v608
    %665 = vmatprep.subr.mxu0 0.0
    %666 = vmatpush1.msra.mxu0 %v609
    %667 = vmatprep.subr.mxu0 0.0
    %668 = vmatpush1.msra.mxu0 %v610
    %669 = vmatprep.subr.mxu0 0.0
    %670 = vmatpush1.msra.mxu0 %v611
    %671 = vmatprep.subr.mxu0 0.0
    %672 = vmatpush1.msra.mxu0 %v612
    %673 = vmatprep.subr.mxu0 0.0
    %674 = vmatpush1.msra.mxu0 %v613
    %675 = vmatprep.subr.mxu0 0.0
    %676 = vmatpush1.msra.mxu0 %v614
    %677 = vmatprep.subr.mxu0 0.0
    %678 = vmatpush1.msra.mxu0 %v615
    %679 = vmatprep.subr.mxu0 0.0
    %680 = vmatpush1.msra.mxu0 %v616
    %681 = vmatprep.subr.mxu0 0.0
    %682 = vmatpush1.msra.mxu0 0.0
    %683 = vmatprep.subr.mxu0 0.0
    %684 = vmatpush1.msra.mxu0 0.0
    %685 = vmatprep.subr.mxu0 0.0
    %686 = vmatpush1.msra.mxu0 0.0
    %687 = vmatprep.subr.mxu0 0.0
    %688 = vmatpush1.msra.mxu0 0.0
    %689 = vmatprep.subr.mxu0 0.0
    %690 = vmatpush1.msra.mxu0 0.0
    %691 = vmatprep.subr.mxu0 0.0
    %692 = vmatpush1.msra.mxu0 0.0
    %693 = vmatprep.subr.mxu0 0.0
    %694 = vmatpush1.msra.mxu0 0.0
    %695 = vmatprep.subr.mxu0 0.0
    %696 = vmatpush1.msra.mxu0 0.0
    %697 = vmatprep.subr.mxu0 0.0
    %698 = vmatpush1.msra.mxu0 0.0
    %699 = vmatprep.subr.mxu0 0.0
    %700 = vmatpush1.msra.mxu0 0.0
    %701 = vmatprep.subr.mxu0 0.0
    %702 = vmatpush1.msra.mxu0 0.0
    %703 = vmatprep.subr.mxu0 0.0
    %704 = vmatpush1.msra.mxu0 0.0
    %705 = vmatprep.subr.mxu0 0.0
    %706 = vmatpush1.msra.mxu0 0.0
    %707 = vmatprep.subr.mxu0 0.0
    %708 = vmatpush1.msra.mxu0 0.0
    %709 = vmatprep.subr.mxu0 0.0
    %710 = vmatpush1.msra.mxu0 0.0
    %711 = vmatprep.subr.mxu0 0.0
    %712 = vmatpush1.msra.mxu0 0.0
    %713 = vmatprep.mubr.f32.mxu0 0.0
    %714 = vmatmul.mubr.f32.gmra.mrb[0].mxu0 %v633
    %v715 = vpop.f32.mrb[0].mxu0
    %v716 = vadd.f32 0.0, %v715
    %v717 = vpop.f32.mrb[0].mxu0
    %718 = vmatprep.mubr.f32.mxu0 0.0
    %719 = vmatmul.mubr.f32.gmra.mrb[0].mxu0 %v634
    %v720 = vpop.f32.mrb[0].mxu0
    %v721 = vadd.f32 0.0, %v720
    %v722 = vpop.f32.mrb[0].mxu0
    %723 = vmatprep.mubr.f32.mxu0 0.0
    %724 = vmatmul.mubr.f32.gmra.mrb[0].mxu0 %v635
    %v725 = vpop.f32.mrb[0].mxu0
    %v726 = vadd.f32 0.0, %v725
    %v727 = vpop.f32.mrb[0].mxu0
    %728 = vmatprep.mubr.f32.mxu0 0.0
    %729 = vmatmul.mubr.f32.gmra.mrb[0].mxu0 %v636
    %v730 = vpop.f32.mrb[0].mxu0
    %v731 = vadd.f32 0.0, %v730
    %v732 = vpop.f32.mrb[0].mxu0
    %733 = vdwg.mxu0
    %734 = vst.msk [vmem:[%s5] sm:$0xff] %vm301, %v716
    %735 = vst.msk [vmem:[%s5 + $0x8] sm:$0xff] %vm301, %v721
    %736 = vst.msk [vmem:[%s5 + $0x10] sm:$0xff] %vm301, %v726
    %737 = vst.msk [vmem:[%s5 + $0x18] sm:$0xff] %vm301, %v731
    %738 = vxpose.xlu0.b32.start [1/16] %v427, 128
    %739 = vxpose.xlu0.b32.cont [2/16] %v428, 128
    %740 = vxpose.xlu0.b32.cont [3/16] %v429, 128
    %741 = vxpose.xlu0.b32.cont [4/16] %v430, 128
    %742 = vxpose.xlu0.b32.cont [5/16] %v431, 128
    %743 = vxpose.xlu0.b32.cont [6/16] %v432, 128
    %744 = vxpose.xlu0.b32.cont [7/16] %v433, 128
    %745 = vxpose.xlu0.b32.cont [8/16] %v434, 128
    %746 = vxpose.xlu0.b32.cont [9/16] %v435, 128
    %747 = vxpose.xlu0.b32.cont [10/16] %v436, 128
    %748 = vxpose.xlu0.b32.cont [11/16] %v437, 128
    %749 = vxpose.xlu0.b32.cont [12/16] %v438, 128
    %750 = vxpose.xlu0.b32.cont [13/16] %v439, 128
    %751 = vxpose.xlu0.b32.cont [14/16] %v440, 128
    %752 = vxpose.xlu0.b32.cont [15/16] %v441, 128
    %753 = vxpose.xlu0.b32.end [16/16] %v442, 128
    %v754 = vpop.trf.xlu0
    %v755 = vpop.trf.xlu0
    %v756 = vpop.trf.xlu0
    %v757 = vpop.trf.xlu0
    %v758 = vpop.trf.xlu0
    %v759 = vpop.trf.xlu0
    %v760 = vpop.trf.xlu0
    %v761 = vpop.trf.xlu0
    %v762 = vpop.trf.xlu0
    %v763 = vpop.trf.xlu0
    %v764 = vpop.trf.xlu0
    %v765 = vpop.trf.xlu0
    %v766 = vpop.trf.xlu0
    %v767 = vpop.trf.xlu0
    %v768 = vpop.trf.xlu0
    %v769 = vpop.trf.xlu0
    %770 = vst [vmem:[#allocation2] sm:$0xff] %v754
    %v771 = vld [vmem:[%s6] sm:$0xff]
    %v772 = vld [vmem:[%s6 + $0x8] sm:$0xff]
    %v773 = vld [vmem:[%s6 + $0x10] sm:$0xff]
    %v774 = vld [vmem:[%s6 + $0x18] sm:$0xff]
    %v775 = vld [vmem:[%s6 + $0x20] sm:$0xff]
    %v776 = vld [vmem:[%s6 + $0x28] sm:$0xff]
    %v777 = vld [vmem:[%s6 + $0x30] sm:$0xff]
    %v778 = vld [vmem:[%s6 + $0x38] sm:$0xff]
    %v779 = vld [vmem:[%s6 + $0x40] sm:$0xff]
    %v780 = vld [vmem:[%s6 + $0x48] sm:$0xff]
    %v781 = vld [vmem:[%s6 + $0x50] sm:$0xff]
    %v782 = vld [vmem:[%s6 + $0x58] sm:$0xff]
    %v783 = vld [vmem:[%s6 + $0x60] sm:$0xff]
    %v784 = vld [vmem:[%s6 + $0x68] sm:$0xff]
    %v785 = vld [vmem:[%s6 + $0x70] sm:$0xff]
    %v786 = vld [vmem:[%s6 + $0x78] sm:$0xff]
    %v787 = vsel %vm301, %v601, 0.0
    %788 = vadd.xlane.f32.xlu0 %v787
    %v789 = vpop.xlane.xlu0 %788
    %v790 = vsel %vm301, %v602, 0.0
    %791 = vadd.xlane.f32.xlu0 %v790
    %v792 = vpop.xlane.xlu0 %791
    %v793 = vsel %vm301, %v603, 0.0
    %794 = vadd.xlane.f32.xlu0 %v793
    %v795 = vpop.xlane.xlu0 %794
    %v796 = vsel %vm301, %v604, 0.0
    %797 = vadd.xlane.f32.xlu0 %v796
    %v798 = vpop.xlane.xlu0 %797
    %v799 = vsel %vm301, %v605, 0.0
    %800 = vadd.xlane.f32.xlu0 %v799
    %v801 = vpop.xlane.xlu0 %800
    %v802 = vsel %vm301, %v606, 0.0
    %803 = vadd.xlane.f32.xlu0 %v802
    %v804 = vpop.xlane.xlu0 %803
    %v805 = vsel %vm301, %v607, 0.0
    %806 = vadd.xlane.f32.xlu0 %v805
    %v807 = vpop.xlane.xlu0 %806
    %v808 = vsel %vm301, %v608, 0.0
    %809 = vadd.xlane.f32.xlu0 %v808
    %v810 = vpop.xlane.xlu0 %809
    %v811 = vsel %vm301, %v609, 0.0
    %812 = vadd.xlane.f32.xlu0 %v811
    %v813 = vpop.xlane.xlu0 %812
    %v814 = vsel %vm301, %v610, 0.0
    %815 = vadd.xlane.f32.xlu0 %v814
    %v816 = vpop.xlane.xlu0 %815
    %v817 = vsel %vm301, %v611, 0.0
    %818 = vadd.xlane.f32.xlu0 %v817
    %v819 = vpop.xlane.xlu0 %818
    %v820 = vsel %vm301, %v612, 0.0
    %821 = vadd.xlane.f32.xlu0 %v820
    %v822 = vpop.xlane.xlu0 %821
    %v823 = vsel %vm301, %v613, 0.0
    %824 = vadd.xlane.f32.xlu0 %v823
    %v825 = vpop.xlane.xlu0 %824
    %v826 = vsel %vm301, %v614, 0.0
    %827 = vadd.xlane.f32.xlu0 %v826
    %v828 = vpop.xlane.xlu0 %827
    %v829 = vsel %vm301, %v615, 0.0
    %830 = vadd.xlane.f32.xlu0 %v829
    %v831 = vpop.xlane.xlu0 %830
    %v832 = vsel %vm301, %v616, 0.0
    %833 = vadd.xlane.f32.xlu0 %v832
    %v834 = vpop.xlane.xlu0 %833
    %v835 = vadd.f32 %v771, %v789
    %v836 = vadd.f32 %v772, %v792
    %v837 = vadd.f32 %v773, %v795
    %v838 = vadd.f32 %v774, %v798
    %v839 = vadd.f32 %v775, %v801
    %v840 = vadd.f32 %v776, %v804
    %v841 = vadd.f32 %v777, %v807
    %v842 = vadd.f32 %v778, %v810
    %v843 = vadd.f32 %v779, %v813
    %v844 = vadd.f32 %v780, %v816
    %v845 = vadd.f32 %v781, %v819
    %v846 = vadd.f32 %v782, %v822
    %v847 = vadd.f32 %v783, %v825
    %v848 = vadd.f32 %v784, %v828
    %v849 = vadd.f32 %v785, %v831
    %v850 = vadd.f32 %v786, %v834
    %vm851 = vcmask 7168
    %852 = vst.msk [vmem:[%s6] sm:$0xff] %vm851, %v835
    %853 = vst.msk [vmem:[%s6 + $0x8] sm:$0xff] %vm851, %v836
    %854 = vst.msk [vmem:[%s6 + $0x10] sm:$0xff] %vm851, %v837
    %855 = vst.msk [vmem:[%s6 + $0x18] sm:$0xff] %vm851, %v838
    %856 = vst.msk [vmem:[%s6 + $0x20] sm:$0xff] %vm851, %v839
    %857 = vst.msk [vmem:[%s6 + $0x28] sm:$0xff] %vm851, %v840
    %858 = vst.msk [vmem:[%s6 + $0x30] sm:$0xff] %vm851, %v841
    %859 = vst.msk [vmem:[%s6 + $0x38] sm:$0xff] %vm851, %v842
    %860 = vst.msk [vmem:[%s6 + $0x40] sm:$0xff] %vm851, %v843
    %861 = vst.msk [vmem:[%s6 + $0x48] sm:$0xff] %vm851, %v844
    %862 = vst.msk [vmem:[%s6 + $0x50] sm:$0xff] %vm851, %v845
    %863 = vst.msk [vmem:[%s6 + $0x58] sm:$0xff] %vm851, %v846
    %864 = vst.msk [vmem:[%s6 + $0x60] sm:$0xff] %vm851, %v847
    %865 = vst.msk [vmem:[%s6 + $0x68] sm:$0xff] %vm851, %v848
    %866 = vst.msk [vmem:[%s6 + $0x70] sm:$0xff] %vm851, %v849
    %867 = vst.msk [vmem:[%s6 + $0x78] sm:$0xff] %vm851, %v850
    %v868 = vld [vmem:[#allocation6] sm:$0xff]
    %v869 = vld [vmem:[#allocation6 + $0x8] sm:$0xff]
    %v870 = vld [vmem:[#allocation6 + $0x10] sm:$0xff]
    %v871 = vld [vmem:[#allocation6 + $0x18] sm:$0xff]
    %v873 = vsel %vm301, %v99, 0
    %v876 = vsel %vm301, %v100, 0
    %v879 = vsel %vm301, %v101, 0
    %v882 = vsel %vm301, %v102, 0
    %v885 = vsel %vm301, %v601, 0
    %v888 = vsel %vm301, %v602, 0
    %v891 = vsel %vm301, %v603, 0
    %v894 = vsel %vm301, %v604, 0
    %v897 = vsel %vm301, %v605, 0
    %v900 = vsel %vm301, %v606, 0
    %v903 = vsel %vm301, %v607, 0
    %v906 = vsel %vm301, %v608, 0
    %v909 = vsel %vm301, %v609, 0
    %v912 = vsel %vm301, %v610, 0
    %v915 = vsel %vm301, %v611, 0
    %v918 = vsel %vm301, %v612, 0
    %v921 = vsel %vm301, %v613, 0
    %v924 = vsel %vm301, %v614, 0
    %v927 = vsel %vm301, %v615, 0
    %v930 = vsel %vm301, %v616, 0
    %932 = vmatprep.subr.mxu0 0.0
    %933 = vmatpush1.xpose.msra.mxu0 %v885
    %934 = vmatprep.subr.mxu0 0.0
    %935 = vmatpush1.xpose.msra.mxu0 %v888
    %936 = vmatprep.subr.mxu0 0.0
    %937 = vmatpush1.xpose.msra.mxu0 %v891
    %938 = vmatprep.subr.mxu0 0.0
    %939 = vmatpush1.xpose.msra.mxu0 %v894
    %940 = vmatprep.subr.mxu0 0.0
    %941 = vmatpush1.xpose.msra.mxu0 %v897
    %942 = vmatprep.subr.mxu0 0.0
    %943 = vmatpush1.xpose.msra.mxu0 %v900
    %944 = vmatprep.subr.mxu0 0.0
    %945 = vmatpush1.xpose.msra.mxu0 %v903
    %946 = vmatprep.subr.mxu0 0.0
    %947 = vmatpush1.xpose.msra.mxu0 %v906
    %948 = vmatprep.subr.mxu0 0.0
    %949 = vmatpush1.xpose.msra.mxu0 %v909
    %950 = vmatprep.subr.mxu0 0.0
    %951 = vmatpush1.xpose.msra.mxu0 %v912
    %952 = vmatprep.subr.mxu0 0.0
    %953 = vmatpush1.xpose.msra.mxu0 %v915
    %954 = vmatprep.subr.mxu0 0.0
    %955 = vmatpush1.xpose.msra.mxu0 %v918
    %956 = vmatprep.subr.mxu0 0.0
    %957 = vmatpush1.xpose.msra.mxu0 %v921
    %958 = vmatprep.subr.mxu0 0.0
    %959 = vmatpush1.xpose.msra.mxu0 %v924
    %960 = vmatprep.subr.mxu0 0.0
    %961 = vmatpush1.xpose.msra.mxu0 %v927
    %962 = vmatprep.subr.mxu0 0.0
    %963 = vmatpush1.xpose.msra.mxu0 %v930
    %964 = vmatprep.subr.mxu0 0.0
    %965 = vmatpush1.xpose.msra.mxu0 0.0
    %966 = vmatprep.subr.mxu0 0.0
    %967 = vmatpush1.xpose.msra.mxu0 0.0
    %968 = vmatprep.subr.mxu0 0.0
    %969 = vmatpush1.xpose.msra.mxu0 0.0
    %970 = vmatprep.subr.mxu0 0.0
    %971 = vmatpush1.xpose.msra.mxu0 0.0
    %972 = vmatprep.subr.mxu0 0.0
    %973 = vmatpush1.xpose.msra.mxu0 0.0
    %974 = vmatprep.subr.mxu0 0.0
    %975 = vmatpush1.xpose.msra.mxu0 0.0
    %976 = vmatprep.subr.mxu0 0.0
    %977 = vmatpush1.xpose.msra.mxu0 0.0
    %978 = vmatprep.subr.mxu0 0.0
    %979 = vmatpush1.xpose.msra.mxu0 0.0
    %980 = vmatprep.subr.mxu0 0.0
    %981 = vmatpush1.xpose.msra.mxu0 0.0
    %982 = vmatprep.subr.mxu0 0.0
    %983 = vmatpush1.xpose.msra.mxu0 0.0
    %984 = vmatprep.subr.mxu0 0.0
    %985 = vmatpush1.xpose.msra.mxu0 0.0
    %986 = vmatprep.subr.mxu0 0.0
    %987 = vmatpush1.xpose.msra.mxu0 0.0
    %988 = vmatprep.subr.mxu0 0.0
    %989 = vmatpush1.xpose.msra.mxu0 0.0
    %990 = vmatprep.subr.mxu0 0.0
    %991 = vmatpush1.xpose.msra.mxu0 0.0
    %992 = vmatprep.subr.mxu0 0.0
    %993 = vmatpush1.xpose.msra.mxu0 0.0
    %994 = vmatprep.subr.mxu0 0.0
    %995 = vmatpush1.xpose.msra.mxu0 0.0
    %996 = vmatprep.mubr.f32.mxu0 0.0
    %997 = vmatmul.mubr.f32.gmra.mrb[0].mxu0 %v873
    %v998 = vpop.f32.mrb[0].mxu0
    %v999 = vadd.f32 0.0, %v998
    %v1000 = vpop.f32.mrb[0].mxu0
    %1001 = vmatprep.mubr.f32.mxu0 0.0
    %1002 = vmatmul.mubr.f32.gmra.mrb[0].mxu0 %v876
    %v1003 = vpop.f32.mrb[0].mxu0
    %v1004 = vadd.f32 0.0, %v1003
    %v1005 = vpop.f32.mrb[0].mxu0
    %1006 = vmatprep.mubr.f32.mxu0 0.0
    %1007 = vmatmul.mubr.f32.gmra.mrb[0].mxu0 %v879
    %v1008 = vpop.f32.mrb[0].mxu0
    %v1009 = vadd.f32 0.0, %v1008
    %v1010 = vpop.f32.mrb[0].mxu0
    %1011 = vmatprep.mubr.f32.mxu0 0.0
    %1012 = vmatmul.mubr.f32.gmra.mrb[0].mxu0 %v882
    %v1013 = vpop.f32.mrb[0].mxu0
    %v1014 = vadd.f32 0.0, %v1013
    %v1015 = vpop.f32.mrb[0].mxu0
    %1016 = vdwg.mxu0
    %v1017 = vadd.f32 %v868, %v999
    %v1018 = vadd.f32 %v869, %v1004
    %v1019 = vadd.f32 %v870, %v1009
    %v1020 = vadd.f32 %v871, %v1014
    %1021 = vst [vmem:[#allocation6] sm:$0xff] %v1017
    %1022 = vst [vmem:[#allocation6 + $0x8] sm:$0xff] %v1018
    %1023 = vst [vmem:[#allocation6 + $0x10] sm:$0xff] %v1019
    %1024 = vst [vmem:[#allocation6 + $0x18] sm:$0xff] %v1020
    %v1025 = vsub.f32 %v716, %v99
    %v1026 = vsub.f32 %v721, %v100
    %v1027 = vsub.f32 %v726, %v101
    %v1028 = vsub.f32 %v731, %v102
    %v1029 = vld [vmem:[#allocation7] sm:$0x1]
    %v1030 = vmul.f32 %v1025, %v1025
    %v1031 = vmul.f32 %v1026, %v1026
    %v1032 = vmul.f32 %v1027, %v1027
    %v1033 = vmul.f32 %v1028, %v1028
    %v1034 = vsel %vm301, %v1030, 0.0
    %v1035 = vsel %vm301, %v1031, 0.0
    %v1036 = vadd.f32 %v1034, %v1035
    %v1037 = vsel %vm301, %v1032, 0.0
    %v1038 = vadd.f32 %v1036, %v1037
    %v1039 = vsel %vm301, %v1033, 0.0
    %v1040 = vadd.f32 %v1038, %v1039
    %v1041 = vrot.slane %v1040, 4
    %v1042 = vadd.f32 %v1040, %v1041
    %v1043 = vrot.slane %v1042, 2
    %v1044 = vadd.f32 %v1042, %v1043
    %v1045 = vrot.slane %v1044, 1
    %v1046 = vadd.f32 %v1044, %v1045
    %v1047 = vadd.f32 %v1029, %v1046
    %1048 = vst.msk [vmem:[#allocation7] sm:$0x1] %vm567, %v1047
    %s1049 = scalar_lea.vmem %s0, 32
    %v1050 = vld [vmem:[%s1049] sm:$0xff]
    %v1051 = vld [vmem:[%s1049 + $0x8] sm:$0xff]
    %v1052 = vld [vmem:[%s1049 + $0x10] sm:$0xff]
    %v1053 = vld [vmem:[%s1049 + $0x18] sm:$0xff]
    %1054 = vmatprep.subr.mxu0 0.0
    %1055 = vmatpush1.msra.mxu0 %v1050
    %1056 = vmatprep.subr.mxu0 0.0
    %1057 = vmatpush1.msra.mxu0 %v1051
    %1058 = vmatprep.subr.mxu0 0.0
    %1059 = vmatpush1.msra.mxu0 %v1052
    %1060 = vmatprep.subr.mxu0 0.0
    %1061 = vmatpush1.msra.mxu0 %v1053
    %1062 = vmatprep.subr.mxu0 0.0
    %1063 = vmatpush1.msra.mxu0 0.0
    %1064 = vmatprep.subr.mxu0 0.0
    %1065 = vmatpush1.msra.mxu0 0.0
    %1066 = vmatprep.subr.mxu0 0.0
    %1067 = vmatpush1.msra.mxu0 0.0
    %1068 = vmatprep.subr.mxu0 0.0
    %1069 = vmatpush1.msra.mxu0 0.0
    %1070 = vmatprep.subr.mxu0 0.0
    %1071 = vmatpush1.msra.mxu0 0.0
    %1072 = vmatprep.subr.mxu0 0.0
    %1073 = vmatpush1.msra.mxu0 0.0
    %1074 = vmatprep.subr.mxu0 0.0
    %1075 = vmatpush1.msra.mxu0 0.0
    %1076 = vmatprep.subr.mxu0 0.0
    %1077 = vmatpush1.msra.mxu0 0.0
    %1078 = vmatprep.subr.mxu0 0.0
    %1079 = vmatpush1.msra.mxu0 0.0
    %1080 = vmatprep.subr.mxu0 0.0
    %1081 = vmatpush1.msra.mxu0 0.0
    %1082 = vmatprep.subr.mxu0 0.0
    %1083 = vmatpush1.msra.mxu0 0.0
    %1084 = vmatprep.subr.mxu0 0.0
    %1085 = vmatpush1.msra.mxu0 0.0
    %1086 = vmatprep.subr.mxu0 0.0
    %1087 = vmatpush1.msra.mxu0 0.0
    %1088 = vmatprep.subr.mxu0 0.0
    %1089 = vmatpush1.msra.mxu0 0.0
    %1090 = vmatprep.subr.mxu0 0.0
    %1091 = vmatpush1.msra.mxu0 0.0
    %1092 = vmatprep.subr.mxu0 0.0
    %1093 = vmatpush1.msra.mxu0 0.0
    %1094 = vmatprep.subr.mxu0 0.0
    %1095 = vmatpush1.msra.mxu0 0.0
    %1096 = vmatprep.subr.mxu0 0.0
    %1097 = vmatpush1.msra.mxu0 0.0
    %1098 = vmatprep.subr.mxu0 0.0
    %1099 = vmatpush1.msra.mxu0 0.0
    %1100 = vmatprep.subr.mxu0 0.0
    %1101 = vmatpush1.msra.mxu0 0.0
    %1102 = vmatprep.subr.mxu0 0.0
    %1103 = vmatpush1.msra.mxu0 0.0
    %1104 = vmatprep.subr.mxu0 0.0
    %1105 = vmatpush1.msra.mxu0 0.0
    %1106 = vmatprep.subr.mxu0 0.0
    %1107 = vmatpush1.msra.mxu0 0.0
    %1108 = vmatprep.subr.mxu0 0.0
    %1109 = vmatpush1.msra.mxu0 0.0
    %1110 = vmatprep.subr.mxu0 0.0
    %1111 = vmatpush1.msra.mxu0 0.0
    %1112 = vmatprep.subr.mxu0 0.0
    %1113 = vmatpush1.msra.mxu0 0.0
    %1114 = vmatprep.subr.mxu0 0.0
    %1115 = vmatpush1.msra.mxu0 0.0
    %1116 = vmatprep.subr.mxu0 0.0
    %1117 = vmatpush1.msra.mxu0 0.0
    %1118 = vmatprep.mubr.f32.mxu0 0.0
    %1119 = vmatmul.mubr.f32.gmra.mrb[0].mxu0 %v105
    %v1120 = vpop.f32.mrb[0].mxu0
    %v1121 = vadd.f32 0.0, %v1120
    %v1122 = vpop.f32.mrb[0].mxu0
    %1123 = vmatprep.mubr.f32.mxu0 0.0
    %1124 = vmatmul.mubr.f32.gmra.mrb[0].mxu0 %v108
    %v1125 = vpop.f32.mrb[0].mxu0
    %v1126 = vadd.f32 0.0, %v1125
    %v1127 = vpop.f32.mrb[0].mxu0
    %1128 = vmatprep.mubr.f32.mxu0 0.0
    %1129 = vmatmul.mubr.f32.gmra.mrb[0].mxu0 %v111
    %v1130 = vpop.f32.mrb[0].mxu0
    %v1131 = vadd.f32 0.0, %v1130
    %v1132 = vpop.f32.mrb[0].mxu0
    %1133 = vmatprep.mubr.f32.mxu0 0.0
    %1134 = vmatmul.mubr.f32.gmra.mrb[0].mxu0 %v114
    %v1135 = vpop.f32.mrb[0].mxu0
    %v1136 = vadd.f32 0.0, %v1135
    %v1137 = vpop.f32.mrb[0].mxu0
    %1138 = vmatprep.mubr.f32.mxu0 0.0
    %1139 = vmatmul.mubr.f32.gmra.mrb[0].mxu0 %v117
    %v1140 = vpop.f32.mrb[0].mxu0
    %v1141 = vadd.f32 0.0, %v1140
    %v1142 = vpop.f32.mrb[0].mxu0
    %1143 = vmatprep.mubr.f32.mxu0 0.0
    %1144 = vmatmul.mubr.f32.gmra.mrb[0].mxu0 %v120
    %v1145 = vpop.f32.mrb[0].mxu0
    %v1146 = vadd.f32 0.0, %v1145
    %v1147 = vpop.f32.mrb[0].mxu0
    %1148 = vmatprep.mubr.f32.mxu0 0.0
    %1149 = vmatmul.mubr.f32.gmra.mrb[0].mxu0 %v123
    %v1150 = vpop.f32.mrb[0].mxu0
    %v1151 = vadd.f32 0.0, %v1150
    %v1152 = vpop.f32.mrb[0].mxu0
    %1153 = vmatprep.mubr.f32.mxu0 0.0
    %1154 = vmatmul.mubr.f32.gmra.mrb[0].mxu0 %v126
    %v1155 = vpop.f32.mrb[0].mxu0
    %v1156 = vadd.f32 0.0, %v1155
    %v1157 = vpop.f32.mrb[0].mxu0
    %1158 = vmatprep.mubr.f32.mxu0 0.0
    %1159 = vmatmul.mubr.f32.gmra.mrb[0].mxu0 %v129
    %v1160 = vpop.f32.mrb[0].mxu0
    %v1161 = vadd.f32 0.0, %v1160
    %v1162 = vpop.f32.mrb[0].mxu0
    %1163 = vmatprep.mubr.f32.mxu0 0.0
    %1164 = vmatmul.mubr.f32.gmra.mrb[0].mxu0 %v132
    %v1165 = vpop.f32.mrb[0].mxu0
    %v1166 = vadd.f32 0.0, %v1165
    %v1167 = vpop.f32.mrb[0].mxu0
    %1168 = vmatprep.mubr.f32.mxu0 0.0
    %1169 = vmatmul.mubr.f32.gmra.mrb[0].mxu0 %v135
    %v1170 = vpop.f32.mrb[0].mxu0
    %v1171 = vadd.f32 0.0, %v1170
    %v1172 = vpop.f32.mrb[0].mxu0
    %1173 = vmatprep.mubr.f32.mxu0 0.0
    %1174 = vmatmul.mubr.f32.gmra.mrb[0].mxu0 %v138
    %v1175 = vpop.f32.mrb[0].mxu0
    %v1176 = vadd.f32 0.0, %v1175
    %v1177 = vpop.f32.mrb[0].mxu0
    %1178 = vmatprep.mubr.f32.mxu0 0.0
    %1179 = vmatmul.mubr.f32.gmra.mrb[0].mxu0 %v141
    %v1180 = vpop.f32.mrb[0].mxu0
    %v1181 = vadd.f32 0.0, %v1180
    %v1182 = vpop.f32.mrb[0].mxu0
    %1183 = vmatprep.mubr.f32.mxu0 0.0
    %1184 = vmatmul.mubr.f32.gmra.mrb[0].mxu0 %v144
    %v1185 = vpop.f32.mrb[0].mxu0
    %v1186 = vadd.f32 0.0, %v1185
    %v1187 = vpop.f32.mrb[0].mxu0
    %1188 = vmatprep.mubr.f32.mxu0 0.0
    %1189 = vmatmul.mubr.f32.gmra.mrb[0].mxu0 %v147
    %v1190 = vpop.f32.mrb[0].mxu0
    %v1191 = vadd.f32 0.0, %v1190
    %v1192 = vpop.f32.mrb[0].mxu0
    %1193 = vmatprep.mubr.f32.mxu0 0.0
    %1194 = vmatmul.mubr.f32.gmra.mrb[0].mxu0 %v150
    %v1195 = vpop.f32.mrb[0].mxu0
    %v1196 = vadd.f32 0.0, %v1195
    %v1197 = vpop.f32.mrb[0].mxu0
    %1198 = vdwg.mxu0
    %v1199 = vmul.f32 %v1050, %v1050
    %v1200 = vmul.f32 %v1051, %v1051
    %v1201 = vmul.f32 %v1052, %v1052
    %v1202 = vmul.f32 %v1053, %v1053
    %v1203 = vsel %vm301, %v1199, 0.0
    %v1204 = vsel %vm301, %v1200, 0.0
    %v1205 = vadd.f32 %v1203, %v1204
    %v1206 = vsel %vm301, %v1201, 0.0
    %v1207 = vadd.f32 %v1205, %v1206
    %v1208 = vsel %vm301, %v1202, 0.0
    %v1209 = vadd.f32 %v1207, %v1208
    %v1210 = vrot.slane %v1209, 4
    %v1211 = vadd.f32 %v1209, %v1210
    %v1212 = vrot.slane %v1211, 2
    %v1213 = vadd.f32 %v1211, %v1212
    %v1214 = vrot.slane %v1213, 1
    %v1215 = vadd.f32 %v1213, %v1214
    %v1216 = vmul.f32 %v1121, 2.0
    %v1217 = vmul.f32 %v1126, 2.0
    %v1218 = vmul.f32 %v1131, 2.0
    %v1219 = vmul.f32 %v1136, 2.0
    %v1220 = vmul.f32 %v1141, 2.0
    %v1221 = vmul.f32 %v1146, 2.0
    %v1222 = vmul.f32 %v1151, 2.0
    %v1223 = vmul.f32 %v1156, 2.0
    %v1224 = vmul.f32 %v1161, 2.0
    %v1225 = vmul.f32 %v1166, 2.0
    %v1226 = vmul.f32 %v1171, 2.0
    %v1227 = vmul.f32 %v1176, 2.0
    %v1228 = vmul.f32 %v1181, 2.0
    %v1229 = vmul.f32 %v1186, 2.0
    %v1230 = vmul.f32 %v1191, 2.0
    %v1231 = vmul.f32 %v1196, 2.0
    %v1232 = vsub.f32 %v1216, %v334
    %v1233 = vsub.f32 %v1217, %v339
    %v1234 = vsub.f32 %v1218, %v344
    %v1235 = vsub.f32 %v1219, %v349
    %v1236 = vsub.f32 %v1220, %v354
    %v1237 = vsub.f32 %v1221, %v359
    %v1238 = vsub.f32 %v1222, %v364
    %v1239 = vsub.f32 %v1223, %v369
    %v1240 = vsub.f32 %v1224, %v374
    %v1241 = vsub.f32 %v1225, %v379
    %v1242 = vsub.f32 %v1226, %v384
    %v1243 = vsub.f32 %v1227, %v389
    %v1244 = vsub.f32 %v1228, %v394
    %v1245 = vsub.f32 %v1229, %v399
    %v1246 = vsub.f32 %v1230, %v404
    %v1247 = vsub.f32 %v1231, %v409
    %v1248 = vsub.f32 %v1232, %v1215
    %v1249 = vsub.f32 %v1233, %v1215
    %v1250 = vsub.f32 %v1234, %v1215
    %v1251 = vsub.f32 %v1235, %v1215
    %v1252 = vsub.f32 %v1236, %v1215
    %v1253 = vsub.f32 %v1237, %v1215
    %v1254 = vsub.f32 %v1238, %v1215
    %v1255 = vsub.f32 %v1239, %v1215
    %v1256 = vsub.f32 %v1240, %v1215
    %v1257 = vsub.f32 %v1241, %v1215
    %v1258 = vsub.f32 %v1242, %v1215
    %v1259 = vsub.f32 %v1243, %v1215
    %v1260 = vsub.f32 %v1244, %v1215
    %v1261 = vsub.f32 %v1245, %v1215
    %v1262 = vsub.f32 %v1246, %v1215
    %v1263 = vsub.f32 %v1247, %v1215
    %v1264 = vsel %vm301, %v1248, -inf
    %v1265 = vsel %vm301, %v1249, -inf
    %v1266 = vsel %vm301, %v1250, -inf
    %v1267 = vsel %vm301, %v1251, -inf
    %v1268 = vsel %vm301, %v1252, -inf
    %v1269 = vmax.f32 %v1264, %v1268
    %v1270 = vsel %vm301, %v1253, -inf
    %v1271 = vmax.f32 %v1265, %v1270
    %v1272 = vsel %vm301, %v1254, -inf
    %v1273 = vmax.f32 %v1266, %v1272
    %v1274 = vsel %vm301, %v1255, -inf
    %v1275 = vmax.f32 %v1267, %v1274
    %v1276 = vsel %vm301, %v1256, -inf
    %v1277 = vmax.f32 %v1269, %v1276
    %v1278 = vsel %vm301, %v1257, -inf
    %v1279 = vmax.f32 %v1271, %v1278
    %v1280 = vsel %vm301, %v1258, -inf
    %v1281 = vmax.f32 %v1273, %v1280
    %v1282 = vsel %vm301, %v1259, -inf
    %v1283 = vmax.f32 %v1275, %v1282
    %v1284 = vsel %vm301, %v1260, -inf
    %v1285 = vmax.f32 %v1277, %v1284
    %v1286 = vsel %vm301, %v1261, -inf
    %v1287 = vmax.f32 %v1279, %v1286
    %v1288 = vsel %vm301, %v1262, -inf
    %v1289 = vmax.f32 %v1281, %v1288
    %v1290 = vsel %vm301, %v1263, -inf
    %v1291 = vmax.f32 %v1283, %v1290
    %v1292 = vmax.f32 %v1285, %v1287
    %v1293 = vmax.f32 %v1289, %v1291
    %v1294 = vmax.f32 %v1292, %v1293
    %v1295 = vrot.slane %v1294, 4
    %v1296 = vmax.f32 %v1294, %v1295
    %v1297 = vrot.slane %v1296, 2
    %v1298 = vmax.f32 %v1296, %v1297
    %v1299 = vrot.slane %v1298, 1
    %v1300 = vmax.f32 %v1298, %v1299
    %vm1301 = vcmp.eq.f32.partialorder %v1248, %v1300
    %vm1302 = vcmp.eq.f32.partialorder %v1249, %v1300
    %vm1303 = vcmp.eq.f32.partialorder %v1250, %v1300
    %vm1304 = vcmp.eq.f32.partialorder %v1251, %v1300
    %vm1305 = vcmp.eq.f32.partialorder %v1252, %v1300
    %vm1306 = vcmp.eq.f32.partialorder %v1253, %v1300
    %vm1307 = vcmp.eq.f32.partialorder %v1254, %v1300
    %vm1308 = vcmp.eq.f32.partialorder %v1255, %v1300
    %vm1309 = vcmp.eq.f32.partialorder %v1256, %v1300
    %vm1310 = vcmp.eq.f32.partialorder %v1257, %v1300
    %vm1311 = vcmp.eq.f32.partialorder %v1258, %v1300
    %vm1312 = vcmp.eq.f32.partialorder %v1259, %v1300
    %vm1313 = vcmp.eq.f32.partialorder %v1260, %v1300
    %vm1314 = vcmp.eq.f32.partialorder %v1261, %v1300
    %vm1315 = vcmp.eq.f32.partialorder %v1262, %v1300
    %vm1316 = vcmp.eq.f32.partialorder %v1263, %v1300
    %v1317 = vsel %vm1301, %v83, 128
    %v1318 = vsel %vm1302, %v84, 128
    %v1319 = vsel %vm1303, %v85, 128
    %v1320 = vsel %vm1304, %v86, 128
    %v1321 = vsel %vm1305, %v87, 128
    %v1322 = vsel %vm1306, %v88, 128
    %v1323 = vsel %vm1307, %v89, 128
    %v1324 = vsel %vm1308, %v90, 128
    %v1325 = vsel %vm1309, %v91, 128
    %v1326 = vsel %vm1310, %v92, 128
    %v1327 = vsel %vm1311, %v93, 128
    %v1328 = vsel %vm1312, %v94, 128
    %v1329 = vsel %vm1313, %v95, 128
    %v1330 = vsel %vm1314, %v96, 128
    %v1331 = vsel %vm1315, %v97, 128
    %v1332 = vsel %vm1316, %v98, 128
    %v1333 = vsel %vm301, %v1317, 2147483647
    %v1334 = vsel %vm301, %v1318, 2147483647
    %v1335 = vsel %vm301, %v1319, 2147483647
    %v1336 = vsel %vm301, %v1320, 2147483647
    %v1337 = vsel %vm301, %v1321, 2147483647
    %vm1338 = vcmp.lt.s32.totalorder %v1333, %v1337
    %v1339 = vsel %vm1338, %v1333, %v1337
    %v1340 = vsel %vm301, %v1322, 2147483647
    %vm1341 = vcmp.lt.s32.totalorder %v1334, %v1340
    %v1342 = vsel %vm1341, %v1334, %v1340
    %v1343 = vsel %vm301, %v1323, 2147483647
    %vm1344 = vcmp.lt.s32.totalorder %v1335, %v1343
    %v1345 = vsel %vm1344, %v1335, %v1343
    %v1346 = vsel %vm301, %v1324, 2147483647
    %vm1347 = vcmp.lt.s32.totalorder %v1336, %v1346
    %v1348 = vsel %vm1347, %v1336, %v1346
    %v1349 = vsel %vm301, %v1325, 2147483647
    %vm1350 = vcmp.lt.s32.totalorder %v1339, %v1349
    %v1351 = vsel %vm1350, %v1339, %v1349
    %v1352 = vsel %vm301, %v1326, 2147483647
    %vm1353 = vcmp.lt.s32.totalorder %v1342, %v1352
    %v1354 = vsel %vm1353, %v1342, %v1352
    %v1355 = vsel %vm301, %v1327, 2147483647
    %vm1356 = vcmp.lt.s32.totalorder %v1345, %v1355
    %v1357 = vsel %vm1356, %v1345, %v1355
    %v1358 = vsel %vm301, %v1328, 2147483647
    %vm1359 = vcmp.lt.s32.totalorder %v1348, %v1358
    %v1360 = vsel %vm1359, %v1348, %v1358
    %v1361 = vsel %vm301, %v1329, 2147483647
    %vm1362 = vcmp.lt.s32.totalorder %v1351, %v1361
    %v1363 = vsel %vm1362, %v1351, %v1361
    %v1364 = vsel %vm301, %v1330, 2147483647
    %vm1365 = vcmp.lt.s32.totalorder %v1354, %v1364
    %v1366 = vsel %vm1365, %v1354, %v1364
    %v1367 = vsel %vm301, %v1331, 2147483647
    %vm1368 = vcmp.lt.s32.totalorder %v1357, %v1367
    %v1369 = vsel %vm1368, %v1357, %v1367
    %v1370 = vsel %vm301, %v1332, 2147483647
    %vm1371 = vcmp.lt.s32.totalorder %v1360, %v1370
    %v1372 = vsel %vm1371, %v1360, %v1370
    %vm1373 = vcmp.lt.s32.totalorder %v1363, %v1366
    %v1374 = vsel %vm1373, %v1363, %v1366
    %vm1375 = vcmp.lt.s32.totalorder %v1369, %v1372
    %v1376 = vsel %vm1375, %v1369, %v1372
    %vm1377 = vcmp.lt.s32.totalorder %v1374, %v1376
    %v1378 = vsel %vm1377, %v1374, %v1376
    %v1379 = vrot.slane %v1378, 4
    %vm1380 = vcmp.lt.s32.totalorder %v1378, %v1379
    %v1381 = vsel %vm1380, %v1378, %v1379
    %v1382 = vrot.slane %v1381, 2
    %vm1383 = vcmp.lt.s32.totalorder %v1381, %v1382
    %v1384 = vsel %vm1383, %v1381, %v1382
    %v1385 = vrot.slane %v1384, 1
    %vm1386 = vcmp.lt.s32.totalorder %v1384, %v1385
    %v1387 = vsel %vm1386, %v1384, %v1385
    %1388 = vst.msk [vmem:[#allocation4 + $0x1] sm:$0x1] %vm567, %v1387
    %vm1389 = vcmp.eq.s32.totalorder %v83, %v1387
    %vm1390 = vcmp.eq.s32.totalorder %v84, %v1387
    %vm1391 = vcmp.eq.s32.totalorder %v85, %v1387
    %vm1392 = vcmp.eq.s32.totalorder %v86, %v1387
    %vm1393 = vcmp.eq.s32.totalorder %v87, %v1387
    %vm1394 = vcmp.eq.s32.totalorder %v88, %v1387
    %vm1395 = vcmp.eq.s32.totalorder %v89, %v1387
    %vm1396 = vcmp.eq.s32.totalorder %v90, %v1387
    %vm1397 = vcmp.eq.s32.totalorder %v91, %v1387
    %vm1398 = vcmp.eq.s32.totalorder %v92, %v1387
    %vm1399 = vcmp.eq.s32.totalorder %v93, %v1387
    %vm1400 = vcmp.eq.s32.totalorder %v94, %v1387
    %vm1401 = vcmp.eq.s32.totalorder %v95, %v1387
    %vm1402 = vcmp.eq.s32.totalorder %v96, %v1387
    %vm1403 = vcmp.eq.s32.totalorder %v97, %v1387
    %vm1404 = vcmp.eq.s32.totalorder %v98, %v1387
    %v1405 = vsel %vm1389, 1, 0
    %v1406 = vsel %vm1390, 1, 0
    %v1407 = vsel %vm1391, 1, 0
    %v1408 = vsel %vm1392, 1, 0
    %v1409 = vsel %vm1393, 1, 0
    %v1410 = vsel %vm1394, 1, 0
    %v1411 = vsel %vm1395, 1, 0
    %v1412 = vsel %vm1396, 1, 0
    %v1413 = vsel %vm1397, 1, 0
    %v1414 = vsel %vm1398, 1, 0
    %v1415 = vsel %vm1399, 1, 0
    %v1416 = vsel %vm1400, 1, 0
    %v1417 = vsel %vm1401, 1, 0
    %v1418 = vsel %vm1402, 1, 0
    %v1419 = vsel %vm1403, 1, 0
    %v1420 = vsel %vm1404, 1, 0
    %v1421 = vcvt.s32.f32 %v1405
    %v1422 = vcvt.s32.f32 %v1406
    %v1423 = vcvt.s32.f32 %v1407
    %v1424 = vcvt.s32.f32 %v1408
    %v1425 = vcvt.s32.f32 %v1409
    %v1426 = vcvt.s32.f32 %v1410
    %v1427 = vcvt.s32.f32 %v1411
    %v1428 = vcvt.s32.f32 %v1412
    %v1429 = vcvt.s32.f32 %v1413
    %v1430 = vcvt.s32.f32 %v1414
    %v1431 = vcvt.s32.f32 %v1415
    %v1432 = vcvt.s32.f32 %v1416
    %v1433 = vcvt.s32.f32 %v1417
    %v1434 = vcvt.s32.f32 %v1418
    %v1435 = vcvt.s32.f32 %v1419
    %v1436 = vcvt.s32.f32 %v1420
    %1437 = vmatprep.subr.mxu0 0.0
    %1438 = vmatpush1.msra.mxu0 %v1421
    %1439 = vmatprep.subr.mxu0 0.0
    %1440 = vmatpush1.msra.mxu0 %v1422
    %1441 = vmatprep.subr.mxu0 0.0
    %1442 = vmatpush1.msra.mxu0 %v1423
    %1443 = vmatprep.subr.mxu0 0.0
    %1444 = vmatpush1.msra.mxu0 %v1424
    %1445 = vmatprep.subr.mxu0 0.0
    %1446 = vmatpush1.msra.mxu0 %v1425
    %1447 = vmatprep.subr.mxu0 0.0
    %1448 = vmatpush1.msra.mxu0 %v1426
    %1449 = vmatprep.subr.mxu0 0.0
    %1450 = vmatpush1.msra.mxu0 %v1427
    %1451 = vmatprep.subr.mxu0 0.0
    %1452 = vmatpush1.msra.mxu0 %v1428
    %1453 = vmatprep.subr.mxu0 0.0
    %1454 = vmatpush1.msra.mxu0 %v1429
    %1455 = vmatprep.subr.mxu0 0.0
    %1456 = vmatpush1.msra.mxu0 %v1430
    %1457 = vmatprep.subr.mxu0 0.0
    %1458 = vmatpush1.msra.mxu0 %v1431
    %1459 = vmatprep.subr.mxu0 0.0
    %1460 = vmatpush1.msra.mxu0 %v1432
    %1461 = vmatprep.subr.mxu0 0.0
    %1462 = vmatpush1.msra.mxu0 %v1433
    %1463 = vmatprep.subr.mxu0 0.0
    %1464 = vmatpush1.msra.mxu0 %v1434
    %1465 = vmatprep.subr.mxu0 0.0
    %1466 = vmatpush1.msra.mxu0 %v1435
    %1467 = vmatprep.subr.mxu0 0.0
    %1468 = vmatpush1.msra.mxu0 %v1436
    %1469 = vmatprep.subr.mxu0 0.0
    %1470 = vmatpush1.msra.mxu0 0.0
    %1471 = vmatprep.subr.mxu0 0.0
    %1472 = vmatpush1.msra.mxu0 0.0
    %1473 = vmatprep.subr.mxu0 0.0
    %1474 = vmatpush1.msra.mxu0 0.0
    %1475 = vmatprep.subr.mxu0 0.0
    %1476 = vmatpush1.msra.mxu0 0.0
    %1477 = vmatprep.subr.mxu0 0.0
    %1478 = vmatpush1.msra.mxu0 0.0
    %1479 = vmatprep.subr.mxu0 0.0
    %1480 = vmatpush1.msra.mxu0 0.0
    %1481 = vmatprep.subr.mxu0 0.0
    %1482 = vmatpush1.msra.mxu0 0.0
    %1483 = vmatprep.subr.mxu0 0.0
    %1484 = vmatpush1.msra.mxu0 0.0
    %1485 = vmatprep.subr.mxu0 0.0
    %1486 = vmatpush1.msra.mxu0 0.0
    %1487 = vmatprep.subr.mxu0 0.0
    %1488 = vmatpush1.msra.mxu0 0.0
    %1489 = vmatprep.subr.mxu0 0.0
    %1490 = vmatpush1.msra.mxu0 0.0
    %1491 = vmatprep.subr.mxu0 0.0
    %1492 = vmatpush1.msra.mxu0 0.0
    %1493 = vmatprep.subr.mxu0 0.0
    %1494 = vmatpush1.msra.mxu0 0.0
    %1495 = vmatprep.subr.mxu0 0.0
    %1496 = vmatpush1.msra.mxu0 0.0
    %1497 = vmatprep.subr.mxu0 0.0
    %1498 = vmatpush1.msra.mxu0 0.0
    %1499 = vmatprep.subr.mxu0 0.0
    %1500 = vmatpush1.msra.mxu0 0.0
    %1501 = vmatprep.mubr.f32.mxu0 0.0
    %1502 = vmatmul.mubr.f32.gmra.mrb[0].mxu0 %v633
    %v1503 = vpop.f32.mrb[0].mxu0
    %v1504 = vadd.f32 0.0, %v1503
    %v1505 = vpop.f32.mrb[0].mxu0
    %1506 = vmatprep.mubr.f32.mxu0 0.0
    %1507 = vmatmul.mubr.f32.gmra.mrb[0].mxu0 %v634
    %v1508 = vpop.f32.mrb[0].mxu0
    %v1509 = vadd.f32 0.0, %v1508
    %v1510 = vpop.f32.mrb[0].mxu0
    %1511 = vmatprep.mubr.f32.mxu0 0.0
    %1512 = vmatmul.mubr.f32.gmra.mrb[0].mxu0 %v635
    %v1513 = vpop.f32.mrb[0].mxu0
    %v1514 = vadd.f32 0.0, %v1513
    %v1515 = vpop.f32.mrb[0].mxu0
    %1516 = vmatprep.mubr.f32.mxu0 0.0
    %1517 = vmatmul.mubr.f32.gmra.mrb[0].mxu0 %v636
    %v1518 = vpop.f32.mrb[0].mxu0
    %v1519 = vadd.f32 0.0, %v1518
    %v1520 = vpop.f32.mrb[0].mxu0
    %1521 = vdwg.mxu0
    %s1522 = scalar_lea.vmem %s5, 32
    %1523 = vst.msk [vmem:[%s1522] sm:$0xff] %vm301, %v1504
    %1524 = vst.msk [vmem:[%s1522 + $0x8] sm:$0xff] %vm301, %v1509
    %1525 = vst.msk [vmem:[%s1522 + $0x10] sm:$0xff] %vm301, %v1514
    %1526 = vst.msk [vmem:[%s1522 + $0x18] sm:$0xff] %vm301, %v1519
    %1527 = vxpose.xlu0.b32.start [1/16] %v1248, 128
    %1528 = vxpose.xlu0.b32.cont [2/16] %v1249, 128
    %1529 = vxpose.xlu0.b32.cont [3/16] %v1250, 128
    %1530 = vxpose.xlu0.b32.cont [4/16] %v1251, 128
    %1531 = vxpose.xlu0.b32.cont [5/16] %v1252, 128
    %1532 = vxpose.xlu0.b32.cont [6/16] %v1253, 128
    %1533 = vxpose.xlu0.b32.cont [7/16] %v1254, 128
    %1534 = vxpose.xlu0.b32.cont [8/16] %v1255, 128
    %1535 = vxpose.xlu0.b32.cont [9/16] %v1256, 128
    %1536 = vxpose.xlu0.b32.cont [10/16] %v1257, 128
    %1537 = vxpose.xlu0.b32.cont [11/16] %v1258, 128
    %1538 = vxpose.xlu0.b32.cont [12/16] %v1259, 128
    %1539 = vxpose.xlu0.b32.cont [13/16] %v1260, 128
    %1540 = vxpose.xlu0.b32.cont [14/16] %v1261, 128
    %1541 = vxpose.xlu0.b32.cont [15/16] %v1262, 128
    %1542 = vxpose.xlu0.b32.end [16/16] %v1263, 128
    %v1543 = vpop.trf.xlu0
    %v1544 = vpop.trf.xlu0
    %v1545 = vpop.trf.xlu0
    %v1546 = vpop.trf.xlu0
    %v1547 = vpop.trf.xlu0
    %v1548 = vpop.trf.xlu0
    %v1549 = vpop.trf.xlu0
    %v1550 = vpop.trf.xlu0
    %v1551 = vpop.trf.xlu0
    %v1552 = vpop.trf.xlu0
    %v1553 = vpop.trf.xlu0
    %v1554 = vpop.trf.xlu0
    %v1555 = vpop.trf.xlu0
    %v1556 = vpop.trf.xlu0
    %v1557 = vpop.trf.xlu0
    %v1558 = vpop.trf.xlu0
    %s1559 = scalar_lea.vmem [#allocation2], 8
    %1560 = vst [vmem:[%s1559] sm:$0xff] %v1543
    %v1561 = vld [vmem:[%s6] sm:$0xff]
    %v1562 = vld [vmem:[%s6 + $0x8] sm:$0xff]
    %v1563 = vld [vmem:[%s6 + $0x10] sm:$0xff]
    %v1564 = vld [vmem:[%s6 + $0x18] sm:$0xff]
    %v1565 = vld [vmem:[%s6 + $0x20] sm:$0xff]
    %v1566 = vld [vmem:[%s6 + $0x28] sm:$0xff]
    %v1567 = vld [vmem:[%s6 + $0x30] sm:$0xff]
    %v1568 = vld [vmem:[%s6 + $0x38] sm:$0xff]
    %v1569 = vld [vmem:[%s6 + $0x40] sm:$0xff]
    %v1570 = vld [vmem:[%s6 + $0x48] sm:$0xff]
    %v1571 = vld [vmem:[%s6 + $0x50] sm:$0xff]
    %v1572 = vld [vmem:[%s6 + $0x58] sm:$0xff]
    %v1573 = vld [vmem:[%s6 + $0x60] sm:$0xff]
    %v1574 = vld [vmem:[%s6 + $0x68] sm:$0xff]
    %v1575 = vld [vmem:[%s6 + $0x70] sm:$0xff]
    %v1576 = vld [vmem:[%s6 + $0x78] sm:$0xff]
    %v1577 = vsel %vm301, %v1421, 0.0
    %1578 = vadd.xlane.f32.xlu0 %v1577
    %v1579 = vpop.xlane.xlu0 %1578
    %v1580 = vsel %vm301, %v1422, 0.0
    %1581 = vadd.xlane.f32.xlu0 %v1580
    %v1582 = vpop.xlane.xlu0 %1581
    %v1583 = vsel %vm301, %v1423, 0.0
    %1584 = vadd.xlane.f32.xlu0 %v1583
    %v1585 = vpop.xlane.xlu0 %1584
    %v1586 = vsel %vm301, %v1424, 0.0
    %1587 = vadd.xlane.f32.xlu0 %v1586
    %v1588 = vpop.xlane.xlu0 %1587
    %v1589 = vsel %vm301, %v1425, 0.0
    %1590 = vadd.xlane.f32.xlu0 %v1589
    %v1591 = vpop.xlane.xlu0 %1590
    %v1592 = vsel %vm301, %v1426, 0.0
    %1593 = vadd.xlane.f32.xlu0 %v1592
    %v1594 = vpop.xlane.xlu0 %1593
    %v1595 = vsel %vm301, %v1427, 0.0
    %1596 = vadd.xlane.f32.xlu0 %v1595
    %v1597 = vpop.xlane.xlu0 %1596
    %v1598 = vsel %vm301, %v1428, 0.0
    %1599 = vadd.xlane.f32.xlu0 %v1598
    %v1600 = vpop.xlane.xlu0 %1599
    %v1601 = vsel %vm301, %v1429, 0.0
    %1602 = vadd.xlane.f32.xlu0 %v1601
    %v1603 = vpop.xlane.xlu0 %1602
    %v1604 = vsel %vm301, %v1430, 0.0
    %1605 = vadd.xlane.f32.xlu0 %v1604
    %v1606 = vpop.xlane.xlu0 %1605
    %v1607 = vsel %vm301, %v1431, 0.0
    %1608 = vadd.xlane.f32.xlu0 %v1607
    %v1609 = vpop.xlane.xlu0 %1608
    %v1610 = vsel %vm301, %v1432, 0.0
    %1611 = vadd.xlane.f32.xlu0 %v1610
    %v1612 = vpop.xlane.xlu0 %1611
    %v1613 = vsel %vm301, %v1433, 0.0
    %1614 = vadd.xlane.f32.xlu0 %v1613
    %v1615 = vpop.xlane.xlu0 %1614
    %v1616 = vsel %vm301, %v1434, 0.0
    %1617 = vadd.xlane.f32.xlu0 %v1616
    %v1618 = vpop.xlane.xlu0 %1617
    %v1619 = vsel %vm301, %v1435, 0.0
    %1620 = vadd.xlane.f32.xlu0 %v1619
    %v1621 = vpop.xlane.xlu0 %1620
    %v1622 = vsel %vm301, %v1436, 0.0
    %1623 = vadd.xlane.f32.xlu0 %v1622
    %v1624 = vpop.xlane.xlu0 %1623
    %v1625 = vadd.f32 %v1561, %v1579
    %v1626 = vadd.f32 %v1562, %v1582
    %v1627 = vadd.f32 %v1563, %v1585
    %v1628 = vadd.f32 %v1564, %v1588
    %v1629 = vadd.f32 %v1565, %v1591
    %v1630 = vadd.f32 %v1566, %v1594
    %v1631 = vadd.f32 %v1567, %v1597
    %v1632 = vadd.f32 %v1568, %v1600
    %v1633 = vadd.f32 %v1569, %v1603
    %v1634 = vadd.f32 %v1570, %v1606
    %v1635 = vadd.f32 %v1571, %v1609
    %v1636 = vadd.f32 %v1572, %v1612
    %v1637 = vadd.f32 %v1573, %v1615
    %v1638 = vadd.f32 %v1574, %v1618
    %v1639 = vadd.f32 %v1575, %v1621
    %v1640 = vadd.f32 %v1576, %v1624
    %1641 = vst.msk [vmem:[%s6] sm:$0xff] %vm851, %v1625
    %1642 = vst.msk [vmem:[%s6 + $0x8] sm:$0xff] %vm851, %v1626
    %1643 = vst.msk [vmem:[%s6 + $0x10] sm:$0xff] %vm851, %v1627
    %1644 = vst.msk [vmem:[%s6 + $0x18] sm:$0xff] %vm851, %v1628
    %1645 = vst.msk [vmem:[%s6 + $0x20] sm:$0xff] %vm851, %v1629
    %1646 = vst.msk [vmem:[%s6 + $0x28] sm:$0xff] %vm851, %v1630
    %1647 = vst.msk [vmem:[%s6 + $0x30] sm:$0xff] %vm851, %v1631
    %1648 = vst.msk [vmem:[%s6 + $0x38] sm:$0xff] %vm851, %v1632
    %1649 = vst.msk [vmem:[%s6 + $0x40] sm:$0xff] %vm851, %v1633
    %1650 = vst.msk [vmem:[%s6 + $0x48] sm:$0xff] %vm851, %v1634
    %1651 = vst.msk [vmem:[%s6 + $0x50] sm:$0xff] %vm851, %v1635
    %1652 = vst.msk [vmem:[%s6 + $0x58] sm:$0xff] %vm851, %v1636
    %1653 = vst.msk [vmem:[%s6 + $0x60] sm:$0xff] %vm851, %v1637
    %1654 = vst.msk [vmem:[%s6 + $0x68] sm:$0xff] %vm851, %v1638
    %1655 = vst.msk [vmem:[%s6 + $0x70] sm:$0xff] %vm851, %v1639
    %1656 = vst.msk [vmem:[%s6 + $0x78] sm:$0xff] %vm851, %v1640
    %v1657 = vld [vmem:[#allocation6] sm:$0xff]
    %v1658 = vld [vmem:[#allocation6 + $0x8] sm:$0xff]
    %v1659 = vld [vmem:[#allocation6 + $0x10] sm:$0xff]
    %v1660 = vld [vmem:[#allocation6 + $0x18] sm:$0xff]
    %v1662 = vsel %vm301, %v1050, 0
    %v1665 = vsel %vm301, %v1051, 0
    %v1668 = vsel %vm301, %v1052, 0
    %v1671 = vsel %vm301, %v1053, 0
    %v1674 = vsel %vm301, %v1421, 0
    %v1677 = vsel %vm301, %v1422, 0
    %v1680 = vsel %vm301, %v1423, 0
    %v1683 = vsel %vm301, %v1424, 0
    %v1686 = vsel %vm301, %v1425, 0
    %v1689 = vsel %vm301, %v1426, 0
    %v1692 = vsel %vm301, %v1427, 0
    %v1695 = vsel %vm301, %v1428, 0
    %v1698 = vsel %vm301, %v1429, 0
    %v1701 = vsel %vm301, %v1430, 0
    %v1704 = vsel %vm301, %v1431, 0
    %v1707 = vsel %vm301, %v1432, 0
    %v1710 = vsel %vm301, %v1433, 0
    %v1713 = vsel %vm301, %v1434, 0
    %v1716 = vsel %vm301, %v1435, 0
    %v1719 = vsel %vm301, %v1436, 0
    %1721 = vmatprep.subr.mxu0 0.0
    %1722 = vmatpush1.xpose.msra.mxu0 %v1674
    %1723 = vmatprep.subr.mxu0 0.0
    %1724 = vmatpush1.xpose.msra.mxu0 %v1677
    %1725 = vmatprep.subr.mxu0 0.0
    %1726 = vmatpush1.xpose.msra.mxu0 %v1680
    %1727 = vmatprep.subr.mxu0 0.0
    %1728 = vmatpush1.xpose.msra.mxu0 %v1683
    %1729 = vmatprep.subr.mxu0 0.0
    %1730 = vmatpush1.xpose.msra.mxu0 %v1686
    %1731 = vmatprep.subr.mxu0 0.0
    %1732 = vmatpush1.xpose.msra.mxu0 %v1689
    %1733 = vmatprep.subr.mxu0 0.0
    %1734 = vmatpush1.xpose.msra.mxu0 %v1692
    %1735 = vmatprep.subr.mxu0 0.0
    %1736 = vmatpush1.xpose.msra.mxu0 %v1695
    %1737 = vmatprep.subr.mxu0 0.0
    %1738 = vmatpush1.xpose.msra.mxu0 %v1698
    %1739 = vmatprep.subr.mxu0 0.0
    %1740 = vmatpush1.xpose.msra.mxu0 %v1701
    %1741 = vmatprep.subr.mxu0 0.0
    %1742 = vmatpush1.xpose.msra.mxu0 %v1704
    %1743 = vmatprep.subr.mxu0 0.0
    %1744 = vmatpush1.xpose.msra.mxu0 %v1707
    %1745 = vmatprep.subr.mxu0 0.0
    %1746 = vmatpush1.xpose.msra.mxu0 %v1710
    %1747 = vmatprep.subr.mxu0 0.0
    %1748 = vmatpush1.xpose.msra.mxu0 %v1713
    %1749 = vmatprep.subr.mxu0 0.0
    %1750 = vmatpush1.xpose.msra.mxu0 %v1716
    %1751 = vmatprep.subr.mxu0 0.0
    %1752 = vmatpush1.xpose.msra.mxu0 %v1719
    %1753 = vmatprep.subr.mxu0 0.0
    %1754 = vmatpush1.xpose.msra.mxu0 0.0
    %1755 = vmatprep.subr.mxu0 0.0
    %1756 = vmatpush1.xpose.msra.mxu0 0.0
    %1757 = vmatprep.subr.mxu0 0.0
    %1758 = vmatpush1.xpose.msra.mxu0 0.0
    %1759 = vmatprep.subr.mxu0 0.0
    %1760 = vmatpush1.xpose.msra.mxu0 0.0
    %1761 = vmatprep.subr.mxu0 0.0
    %1762 = vmatpush1.xpose.msra.mxu0 0.0
    %1763 = vmatprep.subr.mxu0 0.0
    %1764 = vmatpush1.xpose.msra.mxu0 0.0
    %1765 = vmatprep.subr.mxu0 0.0
    %1766 = vmatpush1.xpose.msra.mxu0 0.0
    %1767 = vmatprep.subr.mxu0 0.0
    %1768 = vmatpush1.xpose.msra.mxu0 0.0
    %1769 = vmatprep.subr.mxu0 0.0
    %1770 = vmatpush1.xpose.msra.mxu0 0.0
    %1771 = vmatprep.subr.mxu0 0.0
    %1772 = vmatpush1.xpose.msra.mxu0 0.0
    %1773 = vmatprep.subr.mxu0 0.0
    %1774 = vmatpush1.xpose.msra.mxu0 0.0
    %1775 = vmatprep.subr.mxu0 0.0
    %1776 = vmatpush1.xpose.msra.mxu0 0.0
    %1777 = vmatprep.subr.mxu0 0.0
    %1778 = vmatpush1.xpose.msra.mxu0 0.0
    %1779 = vmatprep.subr.mxu0 0.0
    %1780 = vmatpush1.xpose.msra.mxu0 0.0
    %1781 = vmatprep.subr.mxu0 0.0
    %1782 = vmatpush1.xpose.msra.mxu0 0.0
    %1783 = vmatprep.subr.mxu0 0.0
    %1784 = vmatpush1.xpose.msra.mxu0 0.0
    %1785 = vmatprep.mubr.f32.mxu0 0.0
    %1786 = vmatmul.mubr.f32.gmra.mrb[0].mxu0 %v1662
    %v1787 = vpop.f32.mrb[0].mxu0
    %v1788 = vadd.f32 0.0, %v1787
    %v1789 = vpop.f32.mrb[0].mxu0
    %1790 = vmatprep.mubr.f32.mxu0 0.0
    %1791 = vmatmul.mubr.f32.gmra.mrb[0].mxu0 %v1665
    %v1792 = vpop.f32.mrb[0].mxu0
    %v1793 = vadd.f32 0.0, %v1792
    %v1794 = vpop.f32.mrb[0].mxu0
    %1795 = vmatprep.mubr.f32.mxu0 0.0
    %1796 = vmatmul.mubr.f32.gmra.mrb[0].mxu0 %v1668
    %v1797 = vpop.f32.mrb[0].mxu0
    %v1798 = vadd.f32 0.0, %v1797
    %v1799 = vpop.f32.mrb[0].mxu0
    %1800 = vmatprep.mubr.f32.mxu0 0.0
    %1801 = vmatmul.mubr.f32.gmra.mrb[0].mxu0 %v1671
    %v1802 = vpop.f32.mrb[0].mxu0
    %v1803 = vadd.f32 0.0, %v1802
    %v1804 = vpop.f32.mrb[0].mxu0
    %1805 = vdwg.mxu0
    %v1806 = vadd.f32 %v1657, %v1788
    %v1807 = vadd.f32 %v1658, %v1793
    %v1808 = vadd.f32 %v1659, %v1798
    %v1809 = vadd.f32 %v1660, %v1803
    %1810 = vst [vmem:[#allocation6] sm:$0xff] %v1806
    %1811 = vst [vmem:[#allocation6 + $0x8] sm:$0xff] %v1807
    %1812 = vst [vmem:[#allocation6 + $0x10] sm:$0xff] %v1808
    %1813 = vst [vmem:[#allocation6 + $0x18] sm:$0xff] %v1809
    %v1814 = vsub.f32 %v1504, %v1050
    %v1815 = vsub.f32 %v1509, %v1051
    %v1816 = vsub.f32 %v1514, %v1052
    %v1817 = vsub.f32 %v1519, %v1053
    %v1818 = vld [vmem:[#allocation7] sm:$0x1]
    %v1819 = vmul.f32 %v1814, %v1814
    %v1820 = vmul.f32 %v1815, %v1815
    %v1821 = vmul.f32 %v1816, %v1816
    %v1822 = vmul.f32 %v1817, %v1817
    %v1823 = vsel %vm301, %v1819, 0.0
    %v1824 = vsel %vm301, %v1820, 0.0
    %v1825 = vadd.f32 %v1823, %v1824
    %v1826 = vsel %vm301, %v1821, 0.0
    %v1827 = vadd.f32 %v1825, %v1826
    %v1828 = vsel %vm301, %v1822, 0.0
    %v1829 = vadd.f32 %v1827, %v1828
    %v1830 = vrot.slane %v1829, 4
    %v1831 = vadd.f32 %v1829, %v1830
    %v1832 = vrot.slane %v1831, 2
    %v1833 = vadd.f32 %v1831, %v1832
    %v1834 = vrot.slane %v1833, 1
    %v1835 = vadd.f32 %v1833, %v1834
    %v1836 = vadd.f32 %v1818, %v1835
    %1837 = vst.msk [vmem:[#allocation7] sm:$0x1] %vm567, %v1836
    // Predicated region
    $region18: #{tpu_custom_call.1} parent=1 // pred_check
      _
    $region19: #{tpu_custom_call.1} parent=1 // pred_check_branch
      %1839 = sbr.rel (0) target = $region21
    $region20: #{tpu_custom_call.1} parent=1 // pred_region
      %s1841 = ssub.s32 256, 256
      %1842 = vsyncadd [#allocation3], %s1841
      %s1843 = sshll.u32 [#allocation2], 4
      %s1844 = int_to_ptr.vmem [resolvable:$true] %s1843
      %1849 = dma.vmem_to_hbm [thread:$0]  %s1844, 256, %s3, [#allocation3], 128, 128, 8
    $region21: #{tpu_custom_call.1} parent=1 // pred_fallthru
      _
    // Predicated region
    $region22: #{tpu_custom_call.1} parent=1 // pred_check
      _
    $region23: #{tpu_custom_call.1} parent=1 // pred_check_branch
      %1851 = sbr.rel (0) target = $region25
    $region24: #{tpu_custom_call.1} parent=1 // pred_region
      %s1853 = ssub.s32 32, 32
      %1854 = vsyncadd [#allocation5], %s1853
      %s1856 = sshll.u32 [#allocation4], 4
      %s1857 = int_to_ptr.vmem [resolvable:$true] %s1856
      %1859 = dma.vmem_to_hbm [thread:$0]  %s1857, 32, %s4, [#allocation5]
    $region25: #{tpu_custom_call.1} parent=1 // pred_fallthru
      _
    // Predicated region
    $region26: #{tpu_custom_call.1} parent=1 // pred_check
      _
    $region27: #{tpu_custom_call.1} parent=1 // pred_check_branch
      %1861 = sbr.rel (0) target = $region29
    $region28: #{tpu_custom_call.1} parent=1 // pred_region
      _
    $region29: #{tpu_custom_call.1} parent=1 // pred_fallthru
      _
    // Predicated region
    $region30: #{tpu_custom_call.1} parent=1 // pred_check
      _
    $region31: #{tpu_custom_call.1} parent=1 // pred_check_branch
      %1863 = sbr.rel (0) target = $region33
    $region32: #{tpu_custom_call.1} parent=1 // pred_region
      _
    $region33: #{tpu_custom_call.1} parent=1 // pred_fallthru
      _
    // Predicated region
    $region34: #{tpu_custom_call.1} parent=1 // pred_check
      _
    $region35: #{tpu_custom_call.1} parent=1 // pred_check_branch
      %1865 = sbr.rel (0) target = $region37
    $region36: #{tpu_custom_call.1} parent=1 // pred_region
      %s1867 = ssub.s32 512, 512
      %1868 = vsyncadd [#allocation5], %s1867
      %s1869 = sshll.u32 [#allocation6], 4
      %s1870 = int_to_ptr.vmem [resolvable:$true] %s1869
      %1875 = dma.vmem_to_hbm [thread:$0]  %s1870, 512, %s7, [#allocation5], 128, 128, 8
    $region37: #{tpu_custom_call.1} parent=1 // pred_fallthru
      _
    // Predicated region
    $region38: #{tpu_custom_call.1} parent=1 // pred_check
      _
    $region39: #{tpu_custom_call.1} parent=1 // pred_check_branch
      %1877 = sbr.rel (0) target = $region41
    $region40: #{tpu_custom_call.1} parent=1 // pred_region
      %s1879 = ssub.s32 16, 16
      %1880 = vsyncadd [#allocation8], %s1879
      %s1882 = sshll.u32 [#allocation7], 4
      %s1883 = int_to_ptr.vmem [resolvable:$true] %s1882
      %1885 = dma.vmem_to_hbm [thread:$0]  %s1883, 16, %s8, [#allocation8]
    $region41: #{tpu_custom_call.1} parent=1 // pred_fallthru
      _
    // Predicated region
    $region42: #{tpu_custom_call.1} parent=1 // pred_check
      _
    $region43: #{tpu_custom_call.1} parent=1 // pred_check_branch
      %1887 = sbr.rel (0) target = $region45
    $region44: #{tpu_custom_call.1} parent=1 // pred_region
      %1888 = dma.done [#allocation3], 256
    $region45: #{tpu_custom_call.1} parent=1 // pred_fallthru
      _
    // Predicated region
    $region46: #{tpu_custom_call.1} parent=1 // pred_check
      _
    $region47: #{tpu_custom_call.1} parent=1 // pred_check_branch
      %1890 = sbr.rel (0) target = $region49
    $region48: #{tpu_custom_call.1} parent=1 // pred_region
      %1891 = dma.done [#allocation5], 32
    $region49: #{tpu_custom_call.1} parent=1 // pred_fallthru
      _
    // Predicated region
    $region50: #{tpu_custom_call.1} parent=1 // pred_check
      _
    $region51: #{tpu_custom_call.1} parent=1 // pred_check_branch
      %1893 = sbr.rel (0) target = $region53
    $region52: #{tpu_custom_call.1} parent=1 // pred_region
      _
    $region53: #{tpu_custom_call.1} parent=1 // pred_fallthru
      _
    // Predicated region
    $region54: #{tpu_custom_call.1} parent=1 // pred_check
      _
    $region55: #{tpu_custom_call.1} parent=1 // pred_check_branch
      %1895 = sbr.rel (0) target = $region57
    $region56: #{tpu_custom_call.1} parent=1 // pred_region
      _
    $region57: #{tpu_custom_call.1} parent=1 // pred_fallthru
      _
    // Predicated region
    $region58: #{tpu_custom_call.1} parent=1 // pred_check
      _
    $region59: #{tpu_custom_call.1} parent=1 // pred_check_branch
      %1897 = sbr.rel (0) target = $region61
    $region60: #{tpu_custom_call.1} parent=1 // pred_region
      %1898 = dma.done [#allocation5], 512
    $region61: #{tpu_custom_call.1} parent=1 // pred_fallthru
      _
    // Predicated region
    $region62: #{tpu_custom_call.1} parent=1 // pred_check
      _
    $region63: #{tpu_custom_call.1} parent=1 // pred_check_branch
      %1900 = sbr.rel (0) target = $region65
    $region64: #{tpu_custom_call.1} parent=1 // pred_region
      %1901 = dma.done [#allocation8], 16
    $region65: #{tpu_custom_call.1} parent=1 // pred_fallthru
      _
    %1902 = vsyncpa [#allocation3], 1
    %1903 = vsyncpa [#allocation5], 1
    %1904 = vsyncpa [#allocation8], 1

</llo_original>
